<compile_context>
chip_gen: v6e
topology: v6e:2x2x1
jax: 0.10.0
libtpu: 0.0.40
codegen_flags: <defaults>
</compile_context>

<pallas_src>
import functools

import jax
import jax.numpy as jnp
from jax import lax
from jax.experimental import pallas as pl
from jax.experimental.pallas import tpu as pltpu


def _round_up(n, m):
    return ((n + m - 1) // m) * m


def _cnn_kernel(emb_ref, wf_ref, bf_ref, wfc_ref, bfc_ref, sm_ref, lsm_ref,
                *, T, H, KMAX):
    BB, T_pad, E = emb_ref.shape
    M = BB * T_pad
    H3 = 3 * H

    # (BB, T_pad, E) -> (BB*T_pad, E); T_pad % 8 == 0 so this is tile-preserving.
    x = emb_ref[...].reshape(M, E)                                  # bf16
    pad_rows = max(8, _round_up(KMAX - 1, 8))
    flat = jnp.concatenate([x, jnp.zeros((pad_rows, E), x.dtype)], axis=0)

    # Fused conv: acc[b*T_pad + t, :] = sum_k emb[b, t+k, :] @ Wf[k]  (all 3
    # branches share the lhs; Wf packs [conv1 | conv2 | conv3] along columns).
    acc = jnp.dot(x, wf_ref[0], preferred_element_type=jnp.float32)  # (M, 3H) f32
    for k in range(1, KMAX):                                         # fully unrolled
        acc = acc + jnp.dot(flat[k:k + M, :], wf_ref[k],
                            preferred_element_type=jnp.float32)
    acc = acc + bf_ref[...]                                          # (1, 3H) bias
    acc = jnp.maximum(acc, 0.0)                                      # ReLU

    # Mask positions where the conv window would run past the real sequence
    # (partial convs, time padding, padded batch rows). ReLU output is >= 0,
    # so replacing invalid positions with 0 leaves the max-pool exact.
    t_idx = lax.broadcasted_iota(jnp.int32, (M, 1), 0) % T_pad
    col = lax.broadcasted_iota(jnp.int32, (1, H3), 1)
    ksz = 3 + (col >= H).astype(jnp.int32) + (col >= 2 * H).astype(jnp.int32)
    acc = jnp.where((t_idx + ksz) <= T, acc, 0.0)

    # max-pool over time for all three branches at once -> (BB, 3H)
    pooled = jnp.max(acc.reshape(BB, T_pad, H3), axis=1)

    # FC (O padded to 128 lanes; padded columns carry -1e30 bias).
    hidden = (jnp.dot(pooled, wfc_ref[...], preferred_element_type=jnp.float32)
              + bfc_ref[...])                                        # (BB, O_pad)

    m = jnp.max(hidden, axis=1, keepdims=True)
    e = jnp.exp(hidden - m)
    s = jnp.sum(e, axis=1, keepdims=True)
    sm_ref[...] = (e / s).astype(sm_ref.dtype)                        # Softmax
    lsm_ref[...] = (hidden - m - jnp.log(s)).astype(lsm_ref.dtype)    # LogSoftmax


def cnn_forward(embed, w1, b1, w2, b2, w3, b3, wfc, bfc, *, block_b=256):
    """embed: (B, T, E) f32; conv weights (K, E, H); fc weight (3H, O), bias (1, O).

    Returns (softmax, log_softmax), each (B, O) float32."""
    B, T, E = embed.shape
    H = w1.shape[-1]
    O = wfc.shape[-1]
    KMAX = w3.shape[0]
    assert T >= KMAX, "sequence length must be >= largest conv kernel size"

    # ---- one-time host-side packing (layout only, no math) ----
    T_pad = _round_up(T, 8)                           # sublane-aligned time
    O_pad = _round_up(max(O, 128), 128)               # lane-dense outputs
    bb = min(_round_up(block_b, 8), _round_up(B, 8))  # batch block (mult. of 8)
    B_pad = _round_up(B, bb)                          # >=2 steps feed both v7x TCs

    emb_p = jnp.zeros((B_pad, T_pad, E), jnp.bfloat16)
    emb_p = emb_p.at[:B, :T, :].set(embed.astype(jnp.bfloat16))

    # Fuse the three conv branches: per-tap weight (KMAX, E, 3H); zero rows where
    # a branch has fewer taps. Fused bias (1, 3H).
    H3 = 3 * H
    wf = jnp.zeros((KMAX, E, H3), jnp.float32)
    wf = wf.at[:w1.shape[0], :, 0:H].set(w1)
    wf = wf.at[:w2.shape[0], :, H:2 * H].set(w2)
    wf = wf.at[:w3.shape[0], :, 2 * H:3 * H].set(w3)
    wf = wf.astype(jnp.bfloat16)
    bf = jnp.concatenate([b1, b2, b3], axis=1)        # (1, 3H) f32

    # Pad FC to O_pad lanes; padded logits get -1e30 bias (vanish under softmax).
    wfc_p = jnp.zeros((H3, O_pad), jnp.float32).at[:, :O].set(wfc)
    bfc_p = jnp.full((1, O_pad), -1e30, jnp.float32).at[:, :O].set(bfc)

    kern = functools.partial(_cnn_kernel, T=T, H=H, KMAX=KMAX)

    sm_p, lsm_p = pl.pallas_call(
        kern,
        out_shape=(jax.ShapeDtypeStruct((B_pad, O_pad), jnp.float32),
                   jax.ShapeDtypeStruct((B_pad, O_pad), jnp.float32)),
        grid=(B_pad // bb,),
        in_specs=[
            pl.BlockSpec((bb, T_pad, E), lambda i: (i, 0, 0)),   # batch block
            pl.BlockSpec((KMAX, E, H3), lambda i: (0, 0, 0)),    # fused conv W (resident)
            pl.BlockSpec((1, H3), lambda i: (0, 0)),             # fused conv bias
            pl.BlockSpec((H3, O_pad), lambda i: (0, 0)),         # fc W (padded)
            pl.BlockSpec((1, O_pad), lambda i: (0, 0)),          # fc bias (padded)
        ],
        out_specs=(pl.BlockSpec((bb, O_pad), lambda i: (i, 0)),
                   pl.BlockSpec((bb, O_pad), lambda i: (i, 0))),
        compiler_params=pltpu.CompilerParams(
            dimension_semantics=("parallel",)),
    )(emb_p, wf, bf, wfc_p, bfc_p)

    return sm_p[:B, :O], lsm_p[:B, :O]


def _reference(embed, w1, b1, w2, b2, w3, b3, wfc, bfc):
    """Pure-JAX (XLA) reference mirroring the PyTorch forward, f32 throughout."""
    def branch(w, b):
        K = w.shape[0]
        Tout = embed.shape[1] - K + 1
        c = sum(jnp.einsum('bte,eh->bth', embed[:, k:k + Tout, :], w[k])
                for k in range(K)) + b
        c = jnp.maximum(c, 0.0)
        return jnp.max(c, axis=1)                     # (B, H)
    pool = jnp.concatenate([branch(w1, b1), branch(w2, b2), branch(w3, b3)],
                           axis=1)                    # (B, 3H)
    hidden = pool @ wfc + bfc
    return jax.nn.softmax(hidden, axis=1), jax.nn.log_softmax(hidden, axis=1)


if __name__ == "__main__":
    key = jax.random.PRNGKey(0)
    B, T = 2, 16
    x_dim, e_dim, h_dim, o_dim = 50, 32, 16, 8

    keys = jax.random.split(key, 10)

    # Deterministic synthetic parameters (shapes follow the PyTorch __init__).
    emb_table = 0.1 * jax.random.normal(keys[0], (x_dim, e_dim), jnp.float32)
    emb_table = emb_table.at[0].set(0.0)              # padding_idx=0

    def conv_w(k, K):                                 # PyTorch (H,1,K,E) -> (K,E,H)
        return 0.1 * jax.random.normal(k, (K, e_dim, h_dim), jnp.float32)

    w1 = conv_w(keys[1], 3); b1 = 0.1 * jax.random.normal(keys[2], (1, h_dim), jnp.float32)
    w2 = conv_w(keys[3], 4); b2 = 0.1 * jax.random.normal(keys[4], (1, h_dim), jnp.float32)
    w3 = conv_w(keys[5], 5); b3 = 0.1 * jax.random.normal(keys[6], (1, h_dim), jnp.float32)
    wfc = 0.1 * jax.random.normal(keys[7], (3 * h_dim, o_dim), jnp.float32)  # (3H, O)
    bfc = 0.1 * jax.random.normal(keys[8], (1, o_dim), jnp.float32)

    # Inputs: token ids (B, T) int32; lens is unused in forward (as in PyTorch).
    x = jax.random.randint(keys[9], (B, T), 0, x_dim, jnp.int32)

    # Glue: embedding lookup; dropout(p=0.2) is identity at inference.
    embed = emb_table[x]                              # (B, T, E)

    sm, lsm = cnn_forward(embed, w1, b1, w2, b2, w3, b3, wfc, bfc)
    jax.block_until_ready((sm, lsm))

    sm_ref, lsm_ref = _reference(embed, w1, b1, w2, b2, w3, b3, wfc, bfc)

    assert sm.shape == (B, o_dim) and lsm.shape == (B, o_dim)
    assert bool(jnp.all(jnp.isfinite(sm))) and bool(jnp.all(jnp.isfinite(lsm)))
    assert bool(jnp.allclose(sm, sm_ref, atol=5e-2, rtol=5e-2))
    assert bool(jnp.allclose(lsm, lsm_ref, atol=5e-2, rtol=5e-2))
    print("KERNEL_OK")
</pallas_src>

<mosaic_0001>
module attributes {stable_mosaic.version = 11 : i64} {
  func.func @_cnn_kernel(%arg0: i32, %arg1: memref<8x16x32xbf16, #tpu.memory_space<vmem>>, %arg2: memref<5x32x48xbf16, #tpu.memory_space<vmem>>, %arg3: memref<1x48xf32, #tpu.memory_space<vmem>>, %arg4: memref<48x128xf32, #tpu.memory_space<vmem>>, %arg5: memref<1x128xf32, #tpu.memory_space<vmem>>, %arg6: memref<8x128xf32, #tpu.memory_space<vmem>>, %arg7: memref<8x128xf32, #tpu.memory_space<vmem>>) attributes {dimension_semantics = [#tpu.dimension_semantics<parallel>], iteration_bounds = array<i64: 1>, scalar_prefetch = 0 : i64, scratch_operands = 0 : i64, tpu.core_type = #tpu.core_type<tc>, window_params = [{transform_indices = @transform_0, window_bounds = array<i64: 8, 16, 32>}, {pipeline_mode = #tpu.pipeline_mode<synchronous>, transform_indices = @transform_1, window_bounds = array<i64: 5, 32, 48>}, {pipeline_mode = #tpu.pipeline_mode<synchronous>, transform_indices = @transform_2, window_bounds = array<i64: 1, 48>}, {pipeline_mode = #tpu.pipeline_mode<synchronous>, transform_indices = @transform_3, window_bounds = array<i64: 48, 128>}, {pipeline_mode = #tpu.pipeline_mode<synchronous>, transform_indices = @transform_4, window_bounds = array<i64: 1, 128>}, {transform_indices = @transform_5, window_bounds = array<i64: 8, 128>}, {transform_indices = @transform_6, window_bounds = array<i64: 8, 128>}]} {
    %c0 = arith.constant 0 : index
    %c0_0 = arith.constant 0 : index
    %c0_1 = arith.constant 0 : index
    %0 = vector.load %arg1[%c0, %c0_0, %c0_1] : memref<8x16x32xbf16, #tpu.memory_space<vmem>>, vector<8x16x32xbf16>
    %1 = vector.shape_cast %0 : vector<8x16x32xbf16> to vector<128x32xbf16>
    %cst = arith.constant 0.000000e+00 : bf16
    %2 = vector.broadcast %cst : bf16 to vector<8x32xbf16>
    %3 = tpu.concatenate %1, %2 in 0 : vector<128x32xbf16>, vector<8x32xbf16> -> vector<136x32xbf16>
    %c0_2 = arith.constant 0 : index
    %c0_3 = arith.constant 0 : index
    %c0_4 = arith.constant 0 : index
    %4 = vector.load %arg2[%c0_2, %c0_3, %c0_4] : memref<5x32x48xbf16, #tpu.memory_space<vmem>>, vector<1x32x48xbf16>
    %5 = vector.shape_cast %4 : vector<1x32x48xbf16> to vector<32x48xbf16>
    %cst_5 = arith.constant dense<0.000000e+00> : vector<128x48xf32>
    %6 = tpu.matmul %1, %5, %cst_5 {dimension_numbers = #tpu.dot_dimension_numbers<[1], [0], [0], [1], [0, 0, 1, 1], [], []>} : vector<128x32xbf16>, vector<32x48xbf16>, vector<128x48xf32> -> vector<128x48xf32>
    %7 = vector.extract_strided_slice %3 {offsets = [1, 0], sizes = [128, 32], strides = [1, 1]} : vector<136x32xbf16> to vector<128x32xbf16>
    %c1 = arith.constant 1 : index
    %c0_6 = arith.constant 0 : index
    %c0_7 = arith.constant 0 : index
    %8 = vector.load %arg2[%c1, %c0_6, %c0_7] : memref<5x32x48xbf16, #tpu.memory_space<vmem>>, vector<1x32x48xbf16>
    %9 = vector.shape_cast %8 : vector<1x32x48xbf16> to vector<32x48xbf16>
    %cst_8 = arith.constant dense<0.000000e+00> : vector<128x48xf32>
    %10 = tpu.matmul %7, %9, %cst_8 {dimension_numbers = #tpu.dot_dimension_numbers<[1], [0], [0], [1], [0, 0, 1, 1], [], []>} : vector<128x32xbf16>, vector<32x48xbf16>, vector<128x48xf32> -> vector<128x48xf32>
    %11 = arith.addf %6, %10 : vector<128x48xf32>
    %12 = vector.extract_strided_slice %3 {offsets = [2, 0], sizes = [128, 32], strides = [1, 1]} : vector<136x32xbf16> to vector<128x32xbf16>
    %c2 = arith.constant 2 : index
    %c0_9 = arith.constant 0 : index
    %c0_10 = arith.constant 0 : index
    %13 = vector.load %arg2[%c2, %c0_9, %c0_10] : memref<5x32x48xbf16, #tpu.memory_space<vmem>>, vector<1x32x48xbf16>
    %14 = vector.shape_cast %13 : vector<1x32x48xbf16> to vector<32x48xbf16>
    %cst_11 = arith.constant dense<0.000000e+00> : vector<128x48xf32>
    %15 = tpu.matmul %12, %14, %cst_11 {dimension_numbers = #tpu.dot_dimension_numbers<[1], [0], [0], [1], [0, 0, 1, 1], [], []>} : vector<128x32xbf16>, vector<32x48xbf16>, vector<128x48xf32> -> vector<128x48xf32>
    %16 = arith.addf %11, %15 : vector<128x48xf32>
    %17 = vector.extract_strided_slice %3 {offsets = [3, 0], sizes = [128, 32], strides = [1, 1]} : vector<136x32xbf16> to vector<128x32xbf16>
    %c3 = arith.constant 3 : index
    %c0_12 = arith.constant 0 : index
    %c0_13 = arith.constant 0 : index
    %18 = vector.load %arg2[%c3, %c0_12, %c0_13] : memref<5x32x48xbf16, #tpu.memory_space<vmem>>, vector<1x32x48xbf16>
    %19 = vector.shape_cast %18 : vector<1x32x48xbf16> to vector<32x48xbf16>
    %cst_14 = arith.constant dense<0.000000e+00> : vector<128x48xf32>
    %20 = tpu.matmul %17, %19, %cst_14 {dimension_numbers = #tpu.dot_dimension_numbers<[1], [0], [0], [1], [0, 0, 1, 1], [], []>} : vector<128x32xbf16>, vector<32x48xbf16>, vector<128x48xf32> -> vector<128x48xf32>
    %21 = arith.addf %16, %20 : vector<128x48xf32>
    %22 = vector.extract_strided_slice %3 {offsets = [4, 0], sizes = [128, 32], strides = [1, 1]} : vector<136x32xbf16> to vector<128x32xbf16>
    %c4 = arith.constant 4 : index
    %c0_15 = arith.constant 0 : index
    %c0_16 = arith.constant 0 : index
    %23 = vector.load %arg2[%c4, %c0_15, %c0_16] : memref<5x32x48xbf16, #tpu.memory_space<vmem>>, vector<1x32x48xbf16>
    %24 = vector.shape_cast %23 : vector<1x32x48xbf16> to vector<32x48xbf16>
    %cst_17 = arith.constant dense<0.000000e+00> : vector<128x48xf32>
    %25 = tpu.matmul %22, %24, %cst_17 {dimension_numbers = #tpu.dot_dimension_numbers<[1], [0], [0], [1], [0, 0, 1, 1], [], []>} : vector<128x32xbf16>, vector<32x48xbf16>, vector<128x48xf32> -> vector<128x48xf32>
    %26 = arith.addf %21, %25 : vector<128x48xf32>
    %c0_18 = arith.constant 0 : index
    %c0_19 = arith.constant 0 : index
    %27 = vector.load %arg3[%c0_18, %c0_19] : memref<1x48xf32, #tpu.memory_space<vmem>>, vector<1x48xf32>
    %28 = vector.broadcast %27 : vector<1x48xf32> to vector<128x48xf32>
    %29 = arith.addf %26, %28 : vector<128x48xf32>
    %cst_20 = arith.constant 0.000000e+00 : f32
    %30 = vector.broadcast %cst_20 : f32 to vector<128x48xf32>
    %31 = arith.maximumf %29, %30 : vector<128x48xf32>
    %32 = tpu.iota {dimensions = array<i32: 0>} : vector<128x1xi32>
    %c16_i32 = arith.constant 16 : i32
    %c0_i32 = arith.constant 0 : i32
    %33 = arith.cmpi eq, %c16_i32, %c0_i32 : i32
    %c1_i32 = arith.constant 1 : i32
    %34 = arith.select %33, %c1_i32, %c16_i32 : i32
    %35 = vector.broadcast %34 : i32 to vector<128x1xi32>
    %36 = arith.remsi %32, %35 : vector<128x1xi32>
    %c0_i32_21 = arith.constant 0 : i32
    %37 = vector.broadcast %c0_i32_21 : i32 to vector<128x1xi32>
    %38 = arith.cmpi ne, %36, %37 : vector<128x1xi32>
    %c0_i32_22 = arith.constant 0 : i32
    %39 = vector.broadcast %c0_i32_22 : i32 to vector<128x1xi32>
    %40 = arith.cmpi slt, %36, %39 : vector<128x1xi32>
    %c0_i32_23 = arith.constant 0 : i32
    %41 = arith.cmpi slt, %34, %c0_i32_23 : i32
    %42 = vector.broadcast %41 : i1 to vector<128x1xi1>
    %43 = vector.broadcast %42 : vector<128x1xi1> to vector<128x1xi1>
    %44 = arith.xori %40, %43 : vector<128x1xi1>
    %45 = arith.andi %44, %38 : vector<128x1xi1>
    %46 = vector.broadcast %34 : i32 to vector<128x1xi32>
    %47 = arith.addi %36, %46 : vector<128x1xi32>
    %48 = arith.select %45, %47, %36 : vector<128x1xi1>, vector<128x1xi32>
    %49 = tpu.iota {dimensions = array<i32: 1>} : vector<1x48xi32>
    %c16_i32_24 = arith.constant 16 : i32
    %50 = vector.broadcast %c16_i32_24 : i32 to vector<1x48xi32>
    %51 = arith.cmpi sge, %49, %50 : vector<1x48xi32>
    %52 = arith.extui %51 : vector<1x48xi1> to vector<1x48xi32>
    %c3_i32 = arith.constant 3 : i32
    %53 = vector.broadcast %c3_i32 : i32 to vector<1x48xi32>
    %54 = arith.addi %53, %52 : vector<1x48xi32>
    %c32_i32 = arith.constant 32 : i32
    %55 = vector.broadcast %c32_i32 : i32 to vector<1x48xi32>
    %56 = arith.cmpi sge, %49, %55 : vector<1x48xi32>
    %57 = arith.extui %56 : vector<1x48xi1> to vector<1x48xi32>
    %58 = arith.addi %54, %57 : vector<1x48xi32>
    %59 = vector.broadcast %48 : vector<128x1xi32> to vector<128x48xi32>
    %60 = vector.broadcast %58 : vector<1x48xi32> to vector<128x48xi32>
    %61 = arith.addi %59, %60 : vector<128x48xi32>
    %c16_i32_25 = arith.constant 16 : i32
    %62 = vector.broadcast %c16_i32_25 : i32 to vector<128x48xi32>
    %63 = arith.cmpi sle, %61, %62 : vector<128x48xi32>
    %cst_26 = arith.constant 0.000000e+00 : f32
    %64 = vector.broadcast %cst_26 : f32 to vector<128x48xf32>
    %65 = arith.select %63, %31, %64 : vector<128x48xi1>, vector<128x48xf32>
    %66 = vector.shape_cast %65 : vector<128x48xf32> to vector<8x16x48xf32>
    %cst_27 = arith.constant dense<0xFF800000> : vector<8x48xf32>
    %67 = vector.multi_reduction <maximumf>, %66, %cst_27 [1] : vector<8x16x48xf32> to vector<8x48xf32>
    %c0_28 = arith.constant 0 : index
    %c0_29 = arith.constant 0 : index
    %68 = vector.load %arg4[%c0_28, %c0_29] : memref<48x128xf32, #tpu.memory_space<vmem>>, vector<48x128xf32>
    %cst_30 = arith.constant dense<0.000000e+00> : vector<8x128xf32>
    %69 = tpu.matmul %67, %68, %cst_30 {dimension_numbers = #tpu.dot_dimension_numbers<[1], [0], [0], [1], [0, 0, 1, 1], [], []>} : vector<8x48xf32>, vector<48x128xf32>, vector<8x128xf32> -> vector<8x128xf32>
    %c0_31 = arith.constant 0 : index
    %c0_32 = arith.constant 0 : index
    %70 = vector.load %arg5[%c0_31, %c0_32] : memref<1x128xf32, #tpu.memory_space<vmem>>, vector<1x128xf32>
    %71 = vector.broadcast %70 : vector<1x128xf32> to vector<8x128xf32>
    %72 = arith.addf %69, %71 : vector<8x128xf32>
    %cst_33 = arith.constant dense<0xFF800000> : vector<8xf32>
    %73 = vector.multi_reduction <maximumf>, %72, %cst_33 [1] : vector<8x128xf32> to vector<8xf32>
    %74 = vector.shape_cast %73 : vector<8xf32> to vector<8x1xf32>
    %75 = vector.broadcast %74 : vector<8x1xf32> to vector<8x128xf32>
    %76 = arith.subf %72, %75 : vector<8x128xf32>
    %77 = math.exp %76 : vector<8x128xf32>
    %cst_34 = arith.constant dense<0.000000e+00> : vector<8xf32>
    %78 = vector.multi_reduction <add>, %77, %cst_34 [1] : vector<8x128xf32> to vector<8xf32>
    %79 = vector.shape_cast %78 : vector<8xf32> to vector<8x1xf32>
    %80 = vector.broadcast %79 : vector<8x1xf32> to vector<8x128xf32>
    %81 = arith.divf %77, %80 : vector<8x128xf32>
    %c0_35 = arith.constant 0 : index
    %c0_36 = arith.constant 0 : index
    %82 = vector.load %arg6[%c0_35, %c0_36] : memref<8x128xf32, #tpu.memory_space<vmem>>, vector<8x128xf32>
    tpu.vector_store %arg6[%c0_35, %c0_36], %81 {strides = array<i32>} : memref<8x128xf32, #tpu.memory_space<vmem>>, vector<8x128xf32>,
    %83 = vector.broadcast %74 : vector<8x1xf32> to vector<8x128xf32>
    %84 = arith.subf %72, %83 : vector<8x128xf32>
    %85 = math.log %79 : vector<8x1xf32>
    %86 = vector.broadcast %85 : vector<8x1xf32> to vector<8x128xf32>
    %87 = arith.subf %84, %86 : vector<8x128xf32>
    %c0_37 = arith.constant 0 : index
    %c0_38 = arith.constant 0 : index
    %88 = vector.load %arg7[%c0_37, %c0_38] : memref<8x128xf32, #tpu.memory_space<vmem>>, vector<8x128xf32>
    tpu.vector_store %arg7[%c0_37, %c0_38], %87 {strides = array<i32>} : memref<8x128xf32, #tpu.memory_space<vmem>>, vector<8x128xf32>,
    return
  }
  func.func @transform_0(%arg0: i32) -> (i32, i32, i32) {
    %c0_i32 = arith.constant 0 : i32
    %c0_i32_0 = arith.constant 0 : i32
    %c0_i32_1 = arith.constant 0 : i32
    return %arg0, %c0_i32, %c0_i32_0 : i32, i32, i32
  }
  func.func @transform_1(%arg0: i32) -> (i32, i32, i32) {
    %c0_i32 = arith.constant 0 : i32
    %c0_i32_0 = arith.constant 0 : i32
    %c0_i32_1 = arith.constant 0 : i32
    %c0_i32_2 = arith.constant 0 : i32
    return %c0_i32, %c0_i32_0, %c0_i32_1 : i32, i32, i32
  }
  func.func @transform_2(%arg0: i32) -> (i32, i32) {
    %c0_i32 = arith.constant 0 : i32
    %c0_i32_0 = arith.constant 0 : i32
    %c0_i32_1 = arith.constant 0 : i32
    return %c0_i32, %c0_i32_0 : i32, i32
  }
  func.func @transform_3(%arg0: i32) -> (i32, i32) {
    %c0_i32 = arith.constant 0 : i32
    %c0_i32_0 = arith.constant 0 : i32
    %c0_i32_1 = arith.constant 0 : i32
    return %c0_i32, %c0_i32_0 : i32, i32
  }
  func.func @transform_4(%arg0: i32) -> (i32, i32) {
    %c0_i32 = arith.constant 0 : i32
    %c0_i32_0 = arith.constant 0 : i32
    %c0_i32_1 = arith.constant 0 : i32
    return %c0_i32, %c0_i32_0 : i32, i32
  }
  func.func @transform_5(%arg0: i32) -> (i32, i32) {
    %c0_i32 = arith.constant 0 : i32
    %c0_i32_0 = arith.constant 0 : i32
    return %arg0, %c0_i32 : i32, i32
  }
  func.func @transform_6(%arg0: i32) -> (i32, i32) {
    %c0_i32 = arith.constant 0 : i32
    %c0_i32_0 = arith.constant 0 : i32
    return %arg0, %c0_i32 : i32, i32
  }
}

</mosaic_0001>

<llo_original>
// kernel: tpu_custom_call.1
$region0: #{tpu_custom_call.1}
  #allocation0 [shape = 'u32[]', space=smem, size = 0x4, offset = 0x4, fixed_abs, tag = 'smem constant byte address 0x4 - core index']
  #allocation1 [shape = 'u32[144,128]{1,0:T(1,128)}', space=vmem, size = 0x12000, scoped, tag = 'internal scratch']
  %s0 = inlined_call_operand.hbm [shape: bf16[8,16,32], index: 0, kind: input, shape index: {}]
  %s1 = inlined_call_operand.hbm [shape: bf16[5,32,48], index: 1, kind: input, shape index: {}]
  %s2 = inlined_call_operand.vmem [shape: f32[1,48], index: 2, kind: input, shape index: {}]
  %s3 = inlined_call_operand.hbm [shape: f32[48,128], index: 3, kind: input, shape index: {}]
  %s4 = inlined_call_operand.vmem [shape: f32[1,128], index: 4, kind: input, shape index: {}]
  %s5 = inlined_call_operand.hbm [shape: f32[8,128], index: 5, kind: output, shape index: {0}]
  %s6 = inlined_call_operand.hbm [shape: f32[8,128], index: 6, kind: output, shape index: {1}]
  %7 = xla_tuple %s5, %s6
  %s8 = sld [smem:[#allocation0]]
  $region50: #{tpu_custom_call.1} parent=0
    _
  %s10 = ssub.s32 1, %s8
  %s11 = scalar_select 0, %s10, %s8
  $region1: #{tpu_custom_call.1} parent=0
    #allocation2 [shape = 'u8[32768]{0}', space=vmem, size = 0x8000, scoped, tag = 'input window, operand 0, single buffered']
    #allocation3 [shape = 's32[1]{0}', space=sflag, size = 0x4, scoped, tag = 'scoped memory for tpu_custom_call.1']
    #allocation4 [shape = 's32[1]{0}', space=sflag, size = 0x4, scoped, tag = 'scoped memory for tpu_custom_call.1']
    #allocation5 [shape = 'u8[40960]{0}', space=vmem, size = 0xa000, scoped, tag = 'input window, operand 1, single buffered']
    #allocation6 [shape = 's32[1]{0}', space=sflag, size = 0x4, scoped, tag = 'scoped memory for tpu_custom_call.1']
    #allocation7 [shape = 'u8[24576]{0}', space=vmem, size = 0x6000, scoped, tag = 'input window, operand 3, single buffered']
    #allocation8 [shape = 'u8[4096]{0}', space=vmem, size = 0x1000, scoped, tag = 'output window, operand 0, single buffered']
    #allocation9 [shape = 'u8[4096]{0}', space=vmem, size = 0x1000, scoped, tag = 'output window, operand 1, single buffered']
    #allocation10 [shape = 's32[1]{0}', space=sflag, size = 0x4, scoped, tag = 'scoped memory for tpu_custom_call.1']
    %12 = vsyncpa [#allocation3], 0
    %13 = vsyncpa [#allocation6], 0
    %14 = vsyncpa [#allocation4], 0
    %15 = vsyncpa [#allocation10], 0
    // Predicated region
    $region2: #{tpu_custom_call.1} parent=1 // pred_check
      _
    $region3: #{tpu_custom_call.1} parent=1 // pred_check_branch
      %17 = sbr.rel (0) target = $region5
    $region4: #{tpu_custom_call.1} parent=1 // pred_region
      %s19 = ssub.s32 1024, 1024
      %20 = vsyncadd [#allocation3], %s19
      %s21 = sshll.u32 [#allocation2], 4
      %s22 = int_to_ptr.vmem [resolvable:$true] %s21
      %27 = dma.hbm_to_vmem [thread:$0]  %s0, 1024, %s22, [#allocation3], 64, 64, 4
    $region5: #{tpu_custom_call.1} parent=1 // pred_fallthru
      _
    // Predicated region
    $region6: #{tpu_custom_call.1} parent=1 // pred_check
      _
    $region7: #{tpu_custom_call.1} parent=1 // pred_check_branch
      %29 = sbr.rel (0) target = $region9
    $region8: #{tpu_custom_call.1} parent=1 // pred_region
      %s31 = ssub.s32 1280, 1280
      %32 = vsyncadd [#allocation6], %s31
      %s33 = sshll.u32 [#allocation5], 4
      %s34 = int_to_ptr.vmem [resolvable:$true] %s33
      %39 = dma.hbm_to_vmem [thread:$0]  %s1, 1280, %s34, [#allocation6], 64, 64, 4
    $region9: #{tpu_custom_call.1} parent=1 // pred_fallthru
      _
    // Predicated region
    $region10: #{tpu_custom_call.1} parent=1 // pred_check
      _
    $region11: #{tpu_custom_call.1} parent=1 // pred_check_branch
      %41 = sbr.rel (0) target = $region13
    $region12: #{tpu_custom_call.1} parent=1 // pred_region
      _
    $region13: #{tpu_custom_call.1} parent=1 // pred_fallthru
      _
    // Predicated region
    $region14: #{tpu_custom_call.1} parent=1 // pred_check
      _
    $region15: #{tpu_custom_call.1} parent=1 // pred_check_branch
      %43 = sbr.rel (0) target = $region17
    $region16: #{tpu_custom_call.1} parent=1 // pred_region
      %s45 = ssub.s32 768, 768
      %46 = vsyncadd [#allocation6], %s45
      %s47 = sshll.u32 [#allocation7], 4
      %s48 = int_to_ptr.vmem [resolvable:$true] %s47
      %53 = dma.hbm_to_vmem [thread:$0]  %s3, 768, %s48, [#allocation6], 128, 128, 8
    $region17: #{tpu_custom_call.1} parent=1 // pred_fallthru
      _
    // Predicated region
    $region18: #{tpu_custom_call.1} parent=1 // pred_check
      _
    $region19: #{tpu_custom_call.1} parent=1 // pred_check_branch
      %55 = sbr.rel (0) target = $region21
    $region20: #{tpu_custom_call.1} parent=1 // pred_region
      _
    $region21: #{tpu_custom_call.1} parent=1 // pred_fallthru
      _
    // Predicated region
    $region22: #{tpu_custom_call.1} parent=1 // pred_check
      _
    $region23: #{tpu_custom_call.1} parent=1 // pred_check_branch
      %57 = sbr.rel (0) target = $region25
    $region24: #{tpu_custom_call.1} parent=1 // pred_region
      %58 = dma.done [#allocation3], 1024
    $region25: #{tpu_custom_call.1} parent=1 // pred_fallthru
      _
    // Predicated region
    $region26: #{tpu_custom_call.1} parent=1 // pred_check
      _
    $region27: #{tpu_custom_call.1} parent=1 // pred_check_branch
      %60 = sbr.rel (0) target = $region29
    $region28: #{tpu_custom_call.1} parent=1 // pred_region
      %61 = dma.done [#allocation6], 1280
    $region29: #{tpu_custom_call.1} parent=1 // pred_fallthru
      _
    // Predicated region
    $region30: #{tpu_custom_call.1} parent=1 // pred_check
      _
    $region31: #{tpu_custom_call.1} parent=1 // pred_check_branch
      %63 = sbr.rel (0) target = $region33
    $region32: #{tpu_custom_call.1} parent=1 // pred_region
      %64 = dma.done [#allocation6], 768
    $region33: #{tpu_custom_call.1} parent=1 // pred_fallthru
      _
    %v66 = vld [vmem:[#allocation2] sm:$0xf]
    %v67 = vld [vmem:[#allocation2 + $0x4] sm:$0xf]
    %v68 = vld [vmem:[#allocation2 + $0x8] sm:$0xf]
    %v69 = vld [vmem:[#allocation2 + $0xc] sm:$0xf]
    %v70 = vld [vmem:[#allocation2 + $0x10] sm:$0xf]
    %v71 = vld [vmem:[#allocation2 + $0x14] sm:$0xf]
    %v72 = vld [vmem:[#allocation2 + $0x18] sm:$0xf]
    %v73 = vld [vmem:[#allocation2 + $0x1c] sm:$0xf]
    %v74 = vld [vmem:[#allocation2 + $0x20] sm:$0xf]
    %v75 = vld [vmem:[#allocation2 + $0x24] sm:$0xf]
    %v76 = vld [vmem:[#allocation2 + $0x28] sm:$0xf]
    %v77 = vld [vmem:[#allocation2 + $0x2c] sm:$0xf]
    %v78 = vld [vmem:[#allocation2 + $0x30] sm:$0xf]
    %v79 = vld [vmem:[#allocation2 + $0x34] sm:$0xf]
    %v80 = vld [vmem:[#allocation2 + $0x38] sm:$0xf]
    %v81 = vld [vmem:[#allocation2 + $0x3c] sm:$0xf]
    %v98 = vunpack.c.l.b16 %v66
    %v99 = vunpack.c.l.b16 %v67
    %v100 = vunpack.c.l.b16 %v68
    %v101 = vunpack.c.l.b16 %v69
    %v102 = vunpack.c.l.b16 %v70
    %v103 = vunpack.c.l.b16 %v71
    %v104 = vunpack.c.l.b16 %v72
    %v105 = vunpack.c.l.b16 %v73
    %v106 = vunpack.c.l.b16 %v74
    %v107 = vunpack.c.l.b16 %v75
    %v108 = vunpack.c.l.b16 %v76
    %v109 = vunpack.c.l.b16 %v77
    %v110 = vunpack.c.l.b16 %v78
    %v111 = vunpack.c.l.b16 %v79
    %v112 = vunpack.c.l.b16 %v80
    %v113 = vunpack.c.l.b16 %v81
    %v114 = vpack.c.b16 %v99, %v98
    %v115 = vpack.c.b16 %v101, %v100
    %v116 = vpack.c.b16 %v103, %v102
    %v117 = vpack.c.b16 %v105, %v104
    %v118 = vpack.c.b16 %v107, %v106
    %v119 = vpack.c.b16 %v109, %v108
    %v120 = vpack.c.b16 %v111, %v110
    %v121 = vpack.c.b16 %v113, %v112
    %v122 = vld [vmem:[#allocation5] sm:$0xf]
    %v123 = vld [vmem:[#allocation5 + $0x4] sm:$0xf]
    %v124 = vld [vmem:[#allocation5 + $0x8] sm:$0xf]
    %v125 = vld [vmem:[#allocation5 + $0xc] sm:$0xf]
    %s126 = scalar_lea.vmem [#allocation5], 16
    %v127 = vld [vmem:[%s126] sm:$0xf]
    %v128 = vld [vmem:[%s126 + $0x4] sm:$0xf]
    %v129 = vld [vmem:[%s126 + $0x8] sm:$0xf]
    %v130 = vld [vmem:[%s126 + $0xc] sm:$0xf]
    %vm131 = vsmask.f32 7424
    %v133 = vshrl.u32 %v114, 16
    %v135 = vshll.u32 %v114, 16
    %v137 = vrot.slane %v135, 1
    %v138 = vor.u32 %v133, %v137
    %v140 = vshll.u32 %v115, 16
    %v142 = vrot.slane %v140, 1
    %v143 = vsel %vm131, %v138, %v142
    %v144 = vshrl.u32 %v115, 16
    %v146 = vor.u32 %v144, %v142
    %v148 = vshll.u32 %v116, 16
    %v150 = vrot.slane %v148, 1
    %v151 = vsel %vm131, %v146, %v150
    %v152 = vshrl.u32 %v116, 16
    %v154 = vor.u32 %v152, %v150
    %v156 = vshll.u32 %v117, 16
    %v158 = vrot.slane %v156, 1
    %v159 = vsel %vm131, %v154, %v158
    %v160 = vshrl.u32 %v117, 16
    %v162 = vor.u32 %v160, %v158
    %v164 = vshll.u32 %v118, 16
    %v166 = vrot.slane %v164, 1
    %v167 = vsel %vm131, %v162, %v166
    %v168 = vshrl.u32 %v118, 16
    %v170 = vor.u32 %v168, %v166
    %v172 = vshll.u32 %v119, 16
    %v174 = vrot.slane %v172, 1
    %v175 = vsel %vm131, %v170, %v174
    %v176 = vshrl.u32 %v119, 16
    %v178 = vor.u32 %v176, %v174
    %v180 = vshll.u32 %v120, 16
    %v182 = vrot.slane %v180, 1
    %v183 = vsel %vm131, %v178, %v182
    %v184 = vshrl.u32 %v120, 16
    %v186 = vor.u32 %v184, %v182
    %v188 = vshll.u32 %v121, 16
    %v190 = vrot.slane %v188, 1
    %v191 = vsel %vm131, %v186, %v190
    %v192 = vshrl.u32 %v121, 16
    %v194 = vor.u32 %v192, %v190
    %v196 = vshll.u32 0, 16
    %v198 = vrot.slane %v196, 1
    %v199 = vsel %vm131, %v194, %v198
    %v204 = vunpack.c.l.b16 %v127
    %v205 = vunpack.c.l.b16 %v128
    %v206 = vunpack.c.l.b16 %v129
    %v207 = vunpack.c.l.b16 %v130
    %v208 = vpack.c.b16 %v205, %v204
    %v209 = vpack.c.b16 %v207, %v206
    %vm212 = vcmask 261120
    %v214 = vsel %vm212, %v143, 0
    %v217 = vsel %vm212, %v151, 0
    %v220 = vsel %vm212, %v159, 0
    %v223 = vsel %vm212, %v167, 0
    %v226 = vsel %vm212, %v175, 0
    %v229 = vsel %vm212, %v183, 0
    %v232 = vsel %vm212, %v191, 0
    %v235 = vsel %vm212, %v199, 0
    %237 = vmatprep.subr.bf16.mxu0 0
    %238 = vmatpush1.bf16.msra.mxu0 0
    %239 = vmatprep.subr.bf16.mxu0 0
    %240 = vmatpush1.bf16.msra.mxu0 0
    %241 = vmatprep.subr.bf16.mxu0 0
    %242 = vmatpush1.bf16.msra.mxu0 0
    %243 = vmatprep.subr.bf16.mxu0 0
    %244 = vmatpush1.bf16.msra.mxu0 0
    %245 = vmatprep.subr.bf16.mxu0 0
    %246 = vmatpush1.bf16.msra.mxu0 0
    %247 = vmatprep.subr.bf16.mxu0 0
    %248 = vmatpush1.bf16.msra.mxu0 0
    %249 = vmatprep.subr.bf16.mxu0 0
    %250 = vmatpush1.bf16.msra.mxu0 %v209
    %251 = vmatprep.subr.bf16.mxu0 0
    %252 = vmatpush1.bf16.msra.mxu0 %v208
    %253 = vmatprep.subr.bf16.mxu0 0
    %254 = vmatpush2.bf16.msra.mxu0 0
    %255 = vmatprep.subr.bf16.mxu0 0
    %256 = vmatpush2.bf16.msra.mxu0 0
    %257 = vmatprep.subr.bf16.mxu0 0
    %258 = vmatpush2.bf16.msra.mxu0 0
    %259 = vmatprep.subr.bf16.mxu0 0
    %260 = vmatpush2.bf16.msra.mxu0 0
    %261 = vmatprep.subr.bf16.mxu0 0
    %262 = vmatpush2.bf16.msra.mxu0 0
    %263 = vmatprep.subr.bf16.mxu0 0
    %264 = vmatpush2.bf16.msra.mxu0 0
    %265 = vmatprep.subr.bf16.mxu0 0
    %266 = vmatpush2.bf16.msra.mxu0 0
    %267 = vmatprep.subr.bf16.mxu0 0
    %268 = vmatpush2.bf16.msra.mxu0 0
    %269 = vmatprep.mubr.bf16.mxu0 0
    %270 = vmatmul.mubr.bf16.gmra.mxu0 %v214
    %v271 = vpop.f32.mrf.mxu0
    %v272 = vadd.f32 0.0, %v271
    %v273 = vpop.f32.mrf.mxu0
    %v274 = vpop.f32.mrf.mxu0
    %v275 = vadd.f32 0.0, %v274
    %v276 = vpop.f32.mrf.mxu0
    %277 = vmatprep.mubr.bf16.mxu0 0
    %278 = vmatmul.mubr.bf16.gmra.mxu0 %v217
    %v279 = vpop.f32.mrf.mxu0
    %v280 = vadd.f32 0.0, %v279
    %v281 = vpop.f32.mrf.mxu0
    %v282 = vpop.f32.mrf.mxu0
    %v283 = vadd.f32 0.0, %v282
    %v284 = vpop.f32.mrf.mxu0
    %285 = vmatprep.mubr.bf16.mxu0 0
    %286 = vmatmul.mubr.bf16.gmra.mxu0 %v220
    %v287 = vpop.f32.mrf.mxu0
    %v288 = vadd.f32 0.0, %v287
    %v289 = vpop.f32.mrf.mxu0
    %v290 = vpop.f32.mrf.mxu0
    %v291 = vadd.f32 0.0, %v290
    %v292 = vpop.f32.mrf.mxu0
    %293 = vmatprep.mubr.bf16.mxu0 0
    %294 = vmatmul.mubr.bf16.gmra.mxu0 %v223
    %v295 = vpop.f32.mrf.mxu0
    %v296 = vadd.f32 0.0, %v295
    %v297 = vpop.f32.mrf.mxu0
    %v298 = vpop.f32.mrf.mxu0
    %v299 = vadd.f32 0.0, %v298
    %v300 = vpop.f32.mrf.mxu0
    %301 = vmatprep.mubr.bf16.mxu0 0
    %302 = vmatmul.mubr.bf16.gmra.mxu0 %v226
    %v303 = vpop.f32.mrf.mxu0
    %v304 = vadd.f32 0.0, %v303
    %v305 = vpop.f32.mrf.mxu0
    %v306 = vpop.f32.mrf.mxu0
    %v307 = vadd.f32 0.0, %v306
    %v308 = vpop.f32.mrf.mxu0
    %309 = vmatprep.mubr.bf16.mxu0 0
    %310 = vmatmul.mubr.bf16.gmra.mxu0 %v229
    %v311 = vpop.f32.mrf.mxu0
    %v312 = vadd.f32 0.0, %v311
    %v313 = vpop.f32.mrf.mxu0
    %v314 = vpop.f32.mrf.mxu0
    %v315 = vadd.f32 0.0, %v314
    %v316 = vpop.f32.mrf.mxu0
    %317 = vmatprep.mubr.bf16.mxu0 0
    %318 = vmatmul.mubr.bf16.gmra.mxu0 %v232
    %v319 = vpop.f32.mrf.mxu0
    %v320 = vadd.f32 0.0, %v319
    %v321 = vpop.f32.mrf.mxu0
    %v322 = vpop.f32.mrf.mxu0
    %v323 = vadd.f32 0.0, %v322
    %v324 = vpop.f32.mrf.mxu0
    %325 = vmatprep.mubr.bf16.mxu0 0
    %326 = vmatmul.mubr.bf16.gmra.mxu0 %v235
    %v327 = vpop.f32.mrf.mxu0
    %v328 = vadd.f32 0.0, %v327
    %v329 = vpop.f32.mrf.mxu0
    %v330 = vpop.f32.mrf.mxu0
    %v331 = vadd.f32 0.0, %v330
    %v332 = vpop.f32.mrf.mxu0
    %333 = vdwg.mxu0
    %v338 = vunpack.c.l.b16 %v122
    %v339 = vunpack.c.l.b16 %v123
    %v340 = vunpack.c.l.b16 %v124
    %v341 = vunpack.c.l.b16 %v125
    %v342 = vpack.c.b16 %v339, %v338
    %v343 = vpack.c.b16 %v341, %v340
    %v346 = vsel %vm212, %v114, 0
    %v348 = vsel %vm212, %v115, 0
    %v350 = vsel %vm212, %v116, 0
    %v352 = vsel %vm212, %v117, 0
    %v354 = vsel %vm212, %v118, 0
    %v356 = vsel %vm212, %v119, 0
    %v358 = vsel %vm212, %v120, 0
    %v360 = vsel %vm212, %v121, 0
    %362 = vmatprep.subr.bf16.mxu0 0
    %363 = vmatpush1.bf16.msra.mxu0 0
    %364 = vmatprep.subr.bf16.mxu0 0
    %365 = vmatpush1.bf16.msra.mxu0 0
    %366 = vmatprep.subr.bf16.mxu0 0
    %367 = vmatpush1.bf16.msra.mxu0 0
    %368 = vmatprep.subr.bf16.mxu0 0
    %369 = vmatpush1.bf16.msra.mxu0 0
    %370 = vmatprep.subr.bf16.mxu0 0
    %371 = vmatpush1.bf16.msra.mxu0 0
    %372 = vmatprep.subr.bf16.mxu0 0
    %373 = vmatpush1.bf16.msra.mxu0 0
    %374 = vmatprep.subr.bf16.mxu0 0
    %375 = vmatpush1.bf16.msra.mxu0 %v343
    %376 = vmatprep.subr.bf16.mxu0 0
    %377 = vmatpush1.bf16.msra.mxu0 %v342
    %378 = vmatprep.subr.bf16.mxu0 0
    %379 = vmatpush2.bf16.msra.mxu0 0
    %380 = vmatprep.subr.bf16.mxu0 0
    %381 = vmatpush2.bf16.msra.mxu0 0
    %382 = vmatprep.subr.bf16.mxu0 0
    %383 = vmatpush2.bf16.msra.mxu0 0
    %384 = vmatprep.subr.bf16.mxu0 0
    %385 = vmatpush2.bf16.msra.mxu0 0
    %386 = vmatprep.subr.bf16.mxu0 0
    %387 = vmatpush2.bf16.msra.mxu0 0
    %388 = vmatprep.subr.bf16.mxu0 0
    %389 = vmatpush2.bf16.msra.mxu0 0
    %390 = vmatprep.subr.bf16.mxu0 0
    %391 = vmatpush2.bf16.msra.mxu0 0
    %392 = vmatprep.subr.bf16.mxu0 0
    %393 = vmatpush2.bf16.msra.mxu0 0
    %394 = vmatprep.mubr.bf16.mxu0 0
    %395 = vmatmul.mubr.bf16.gmra.mxu0 %v346
    %v396 = vpop.f32.mrf.mxu0
    %v397 = vadd.f32 %v272, %v396
    %v398 = vpop.f32.mrf.mxu0
    %v399 = vpop.f32.mrf.mxu0
    %v400 = vadd.f32 %v275, %v399
    %v401 = vpop.f32.mrf.mxu0
    %402 = vmatprep.mubr.bf16.mxu0 0
    %403 = vmatmul.mubr.bf16.gmra.mxu0 %v348
    %v404 = vpop.f32.mrf.mxu0
    %v405 = vadd.f32 %v280, %v404
    %v406 = vpop.f32.mrf.mxu0
    %v407 = vpop.f32.mrf.mxu0
    %v408 = vadd.f32 %v283, %v407
    %v409 = vpop.f32.mrf.mxu0
    %410 = vmatprep.mubr.bf16.mxu0 0
    %411 = vmatmul.mubr.bf16.gmra.mxu0 %v350
    %v412 = vpop.f32.mrf.mxu0
    %v413 = vadd.f32 %v288, %v412
    %v414 = vpop.f32.mrf.mxu0
    %v415 = vpop.f32.mrf.mxu0
    %v416 = vadd.f32 %v291, %v415
    %v417 = vpop.f32.mrf.mxu0
    %418 = vmatprep.mubr.bf16.mxu0 0
    %419 = vmatmul.mubr.bf16.gmra.mxu0 %v352
    %v420 = vpop.f32.mrf.mxu0
    %v421 = vadd.f32 %v296, %v420
    %v422 = vpop.f32.mrf.mxu0
    %v423 = vpop.f32.mrf.mxu0
    %v424 = vadd.f32 %v299, %v423
    %v425 = vpop.f32.mrf.mxu0
    %426 = vmatprep.mubr.bf16.mxu0 0
    %427 = vmatmul.mubr.bf16.gmra.mxu0 %v354
    %v428 = vpop.f32.mrf.mxu0
    %v429 = vadd.f32 %v304, %v428
    %v430 = vpop.f32.mrf.mxu0
    %v431 = vpop.f32.mrf.mxu0
    %v432 = vadd.f32 %v307, %v431
    %v433 = vpop.f32.mrf.mxu0
    %434 = vmatprep.mubr.bf16.mxu0 0
    %435 = vmatmul.mubr.bf16.gmra.mxu0 %v356
    %v436 = vpop.f32.mrf.mxu0
    %v437 = vadd.f32 %v312, %v436
    %v438 = vpop.f32.mrf.mxu0
    %v439 = vpop.f32.mrf.mxu0
    %v440 = vadd.f32 %v315, %v439
    %v441 = vpop.f32.mrf.mxu0
    %442 = vmatprep.mubr.bf16.mxu0 0
    %443 = vmatmul.mubr.bf16.gmra.mxu0 %v358
    %v444 = vpop.f32.mrf.mxu0
    %v445 = vadd.f32 %v320, %v444
    %v446 = vpop.f32.mrf.mxu0
    %v447 = vpop.f32.mrf.mxu0
    %v448 = vadd.f32 %v323, %v447
    %v449 = vpop.f32.mrf.mxu0
    %450 = vmatprep.mubr.bf16.mxu0 0
    %451 = vmatmul.mubr.bf16.gmra.mxu0 %v360
    %v452 = vpop.f32.mrf.mxu0
    %v453 = vadd.f32 %v328, %v452
    %v454 = vpop.f32.mrf.mxu0
    %v455 = vpop.f32.mrf.mxu0
    %v456 = vadd.f32 %v331, %v455
    %v457 = vpop.f32.mrf.mxu0
    %458 = vdwg.mxu0
    %s459 = scalar_lea.vmem [#allocation5], 32
    %v460 = vld [vmem:[%s459] sm:$0xf]
    %v461 = vld [vmem:[%s459 + $0x4] sm:$0xf]
    %v462 = vld [vmem:[%s459 + $0x8] sm:$0xf]
    %v463 = vld [vmem:[%s459 + $0xc] sm:$0xf]
    %vm465 = vcmask 1046528
    %v466 = vrot.slane %v114, 1
    %v467 = vrot.slane %v115, 1
    %v468 = vsel %vm465, %v466, %v467
    %v469 = vrot.slane %v116, 1
    %v470 = vsel %vm465, %v467, %v469
    %v471 = vrot.slane %v117, 1
    %v472 = vsel %vm465, %v469, %v471
    %v473 = vrot.slane %v118, 1
    %v474 = vsel %vm465, %v471, %v473
    %v475 = vrot.slane %v119, 1
    %v476 = vsel %vm465, %v473, %v475
    %v477 = vrot.slane %v120, 1
    %v478 = vsel %vm465, %v475, %v477
    %v479 = vrot.slane %v121, 1
    %v480 = vsel %vm465, %v477, %v479
    %v481 = vrot.slane 0, 1
    %v482 = vsel %vm465, %v479, %v481
    %v487 = vunpack.c.l.b16 %v460
    %v488 = vunpack.c.l.b16 %v461
    %v489 = vunpack.c.l.b16 %v462
    %v490 = vunpack.c.l.b16 %v463
    %v491 = vpack.c.b16 %v488, %v487
    %v492 = vpack.c.b16 %v490, %v489
    %v496 = vsel %vm212, %v468, 0
    %v499 = vsel %vm212, %v470, 0
    %v502 = vsel %vm212, %v472, 0
    %v505 = vsel %vm212, %v474, 0
    %v508 = vsel %vm212, %v476, 0
    %v511 = vsel %vm212, %v478, 0
    %v514 = vsel %vm212, %v480, 0
    %v517 = vsel %vm212, %v482, 0
    %519 = vmatprep.subr.bf16.mxu0 0
    %520 = vmatpush1.bf16.msra.mxu0 0
    %521 = vmatprep.subr.bf16.mxu0 0
    %522 = vmatpush1.bf16.msra.mxu0 0
    %523 = vmatprep.subr.bf16.mxu0 0
    %524 = vmatpush1.bf16.msra.mxu0 0
    %525 = vmatprep.subr.bf16.mxu0 0
    %526 = vmatpush1.bf16.msra.mxu0 0
    %527 = vmatprep.subr.bf16.mxu0 0
    %528 = vmatpush1.bf16.msra.mxu0 0
    %529 = vmatprep.subr.bf16.mxu0 0
    %530 = vmatpush1.bf16.msra.mxu0 0
    %531 = vmatprep.subr.bf16.mxu0 0
    %532 = vmatpush1.bf16.msra.mxu0 %v492
    %533 = vmatprep.subr.bf16.mxu0 0
    %534 = vmatpush1.bf16.msra.mxu0 %v491
    %535 = vmatprep.subr.bf16.mxu0 0
    %536 = vmatpush2.bf16.msra.mxu0 0
    %537 = vmatprep.subr.bf16.mxu0 0
    %538 = vmatpush2.bf16.msra.mxu0 0
    %539 = vmatprep.subr.bf16.mxu0 0
    %540 = vmatpush2.bf16.msra.mxu0 0
    %541 = vmatprep.subr.bf16.mxu0 0
    %542 = vmatpush2.bf16.msra.mxu0 0
    %543 = vmatprep.subr.bf16.mxu0 0
    %544 = vmatpush2.bf16.msra.mxu0 0
    %545 = vmatprep.subr.bf16.mxu0 0
    %546 = vmatpush2.bf16.msra.mxu0 0
    %547 = vmatprep.subr.bf16.mxu0 0
    %548 = vmatpush2.bf16.msra.mxu0 0
    %549 = vmatprep.subr.bf16.mxu0 0
    %550 = vmatpush2.bf16.msra.mxu0 0
    %551 = vmatprep.mubr.bf16.mxu0 0
    %552 = vmatmul.mubr.bf16.gmra.mxu0 %v496
    %v553 = vpop.f32.mrf.mxu0
    %v554 = vadd.f32 0.0, %v553
    %v555 = vpop.f32.mrf.mxu0
    %v556 = vpop.f32.mrf.mxu0
    %v557 = vadd.f32 0.0, %v556
    %v558 = vpop.f32.mrf.mxu0
    %559 = vmatprep.mubr.bf16.mxu0 0
    %560 = vmatmul.mubr.bf16.gmra.mxu0 %v499
    %v561 = vpop.f32.mrf.mxu0
    %v562 = vadd.f32 0.0, %v561
    %v563 = vpop.f32.mrf.mxu0
    %v564 = vpop.f32.mrf.mxu0
    %v565 = vadd.f32 0.0, %v564
    %v566 = vpop.f32.mrf.mxu0
    %567 = vmatprep.mubr.bf16.mxu0 0
    %568 = vmatmul.mubr.bf16.gmra.mxu0 %v502
    %v569 = vpop.f32.mrf.mxu0
    %v570 = vadd.f32 0.0, %v569
    %v571 = vpop.f32.mrf.mxu0
    %v572 = vpop.f32.mrf.mxu0
    %v573 = vadd.f32 0.0, %v572
    %v574 = vpop.f32.mrf.mxu0
    %575 = vmatprep.mubr.bf16.mxu0 0
    %576 = vmatmul.mubr.bf16.gmra.mxu0 %v505
    %v577 = vpop.f32.mrf.mxu0
    %v578 = vadd.f32 0.0, %v577
    %v579 = vpop.f32.mrf.mxu0
    %v580 = vpop.f32.mrf.mxu0
    %v581 = vadd.f32 0.0, %v580
    %v582 = vpop.f32.mrf.mxu0
    %583 = vmatprep.mubr.bf16.mxu0 0
    %584 = vmatmul.mubr.bf16.gmra.mxu0 %v508
    %v585 = vpop.f32.mrf.mxu0
    %v586 = vadd.f32 0.0, %v585
    %v587 = vpop.f32.mrf.mxu0
    %v588 = vpop.f32.mrf.mxu0
    %v589 = vadd.f32 0.0, %v588
    %v590 = vpop.f32.mrf.mxu0
    %591 = vmatprep.mubr.bf16.mxu0 0
    %592 = vmatmul.mubr.bf16.gmra.mxu0 %v511
    %v593 = vpop.f32.mrf.mxu0
    %v594 = vadd.f32 0.0, %v593
    %v595 = vpop.f32.mrf.mxu0
    %v596 = vpop.f32.mrf.mxu0
    %v597 = vadd.f32 0.0, %v596
    %v598 = vpop.f32.mrf.mxu0
    %599 = vmatprep.mubr.bf16.mxu0 0
    %600 = vmatmul.mubr.bf16.gmra.mxu0 %v514
    %v601 = vpop.f32.mrf.mxu0
    %v602 = vadd.f32 0.0, %v601
    %v603 = vpop.f32.mrf.mxu0
    %v604 = vpop.f32.mrf.mxu0
    %v605 = vadd.f32 0.0, %v604
    %v606 = vpop.f32.mrf.mxu0
    %607 = vmatprep.mubr.bf16.mxu0 0
    %608 = vmatmul.mubr.bf16.gmra.mxu0 %v517
    %v609 = vpop.f32.mrf.mxu0
    %v610 = vadd.f32 0.0, %v609
    %v611 = vpop.f32.mrf.mxu0
    %v612 = vpop.f32.mrf.mxu0
    %v613 = vadd.f32 0.0, %v612
    %v614 = vpop.f32.mrf.mxu0
    %615 = vdwg.mxu0
    %v616 = vadd.f32 %v397, %v554
    %v617 = vadd.f32 %v400, %v557
    %v618 = vadd.f32 %v405, %v562
    %v619 = vadd.f32 %v408, %v565
    %v620 = vadd.f32 %v413, %v570
    %v621 = vadd.f32 %v416, %v573
    %v622 = vadd.f32 %v421, %v578
    %v623 = vadd.f32 %v424, %v581
    %v624 = vadd.f32 %v429, %v586
    %v625 = vadd.f32 %v432, %v589
    %v626 = vadd.f32 %v437, %v594
    %v627 = vadd.f32 %v440, %v597
    %v628 = vadd.f32 %v445, %v602
    %v629 = vadd.f32 %v448, %v605
    %v630 = vadd.f32 %v453, %v610
    %v631 = vadd.f32 %v456, %v613
    %s632 = scalar_lea.vmem [#allocation5], 48
    %v633 = vld [vmem:[%s632] sm:$0xf]
    %v634 = vld [vmem:[%s632 + $0x4] sm:$0xf]
    %v635 = vld [vmem:[%s632 + $0x8] sm:$0xf]
    %v636 = vld [vmem:[%s632 + $0xc] sm:$0xf]
    %vm637 = vsmask.f32 6400
    %v638 = vrot.slane %v133, 1
    %v639 = vrot.slane %v135, 2
    %v640 = vor.u32 %v638, %v639
    %v641 = vrot.slane %v144, 1
    %v642 = vrot.slane %v140, 2
    %v643 = vor.u32 %v641, %v642
    %v644 = vsel %vm637, %v640, %v643
    %v645 = vrot.slane %v152, 1
    %v646 = vrot.slane %v148, 2
    %v647 = vor.u32 %v645, %v646
    %v648 = vsel %vm637, %v643, %v647
    %v649 = vrot.slane %v160, 1
    %v650 = vrot.slane %v156, 2
    %v651 = vor.u32 %v649, %v650
    %v652 = vsel %vm637, %v647, %v651
    %v653 = vrot.slane %v168, 1
    %v654 = vrot.slane %v164, 2
    %v655 = vor.u32 %v653, %v654
    %v656 = vsel %vm637, %v651, %v655
    %v657 = vrot.slane %v176, 1
    %v658 = vrot.slane %v172, 2
    %v659 = vor.u32 %v657, %v658
    %v660 = vsel %vm637, %v655, %v659
    %v661 = vrot.slane %v184, 1
    %v662 = vrot.slane %v180, 2
    %v663 = vor.u32 %v661, %v662
    %v664 = vsel %vm637, %v659, %v663
    %v665 = vrot.slane %v192, 1
    %v666 = vrot.slane %v188, 2
    %v667 = vor.u32 %v665, %v666
    %v668 = vsel %vm637, %v663, %v667
    %v669 = vshrl.u32 0, 16
    %v671 = vrot.slane %v669, 1
    %v672 = vrot.slane %v196, 2
    %v673 = vor.u32 %v671, %v672
    %v674 = vsel %vm637, %v667, %v673
    %v679 = vunpack.c.l.b16 %v633
    %v680 = vunpack.c.l.b16 %v634
    %v681 = vunpack.c.l.b16 %v635
    %v682 = vunpack.c.l.b16 %v636
    %v683 = vpack.c.b16 %v680, %v679
    %v684 = vpack.c.b16 %v682, %v681
    %v688 = vsel %vm212, %v644, 0
    %v691 = vsel %vm212, %v648, 0
    %v694 = vsel %vm212, %v652, 0
    %v697 = vsel %vm212, %v656, 0
    %v700 = vsel %vm212, %v660, 0
    %v703 = vsel %vm212, %v664, 0
    %v706 = vsel %vm212, %v668, 0
    %v709 = vsel %vm212, %v674, 0
    %711 = vmatprep.subr.bf16.mxu0 0
    %712 = vmatpush1.bf16.msra.mxu0 0
    %713 = vmatprep.subr.bf16.mxu0 0
    %714 = vmatpush1.bf16.msra.mxu0 0
    %715 = vmatprep.subr.bf16.mxu0 0
    %716 = vmatpush1.bf16.msra.mxu0 0
    %717 = vmatprep.subr.bf16.mxu0 0
    %718 = vmatpush1.bf16.msra.mxu0 0
    %719 = vmatprep.subr.bf16.mxu0 0
    %720 = vmatpush1.bf16.msra.mxu0 0
    %721 = vmatprep.subr.bf16.mxu0 0
    %722 = vmatpush1.bf16.msra.mxu0 0
    %723 = vmatprep.subr.bf16.mxu0 0
    %724 = vmatpush1.bf16.msra.mxu0 %v684
    %725 = vmatprep.subr.bf16.mxu0 0
    %726 = vmatpush1.bf16.msra.mxu0 %v683
    %727 = vmatprep.subr.bf16.mxu0 0
    %728 = vmatpush2.bf16.msra.mxu0 0
    %729 = vmatprep.subr.bf16.mxu0 0
    %730 = vmatpush2.bf16.msra.mxu0 0
    %731 = vmatprep.subr.bf16.mxu0 0
    %732 = vmatpush2.bf16.msra.mxu0 0
    %733 = vmatprep.subr.bf16.mxu0 0
    %734 = vmatpush2.bf16.msra.mxu0 0
    %735 = vmatprep.subr.bf16.mxu0 0
    %736 = vmatpush2.bf16.msra.mxu0 0
    %737 = vmatprep.subr.bf16.mxu0 0
    %738 = vmatpush2.bf16.msra.mxu0 0
    %739 = vmatprep.subr.bf16.mxu0 0
    %740 = vmatpush2.bf16.msra.mxu0 0
    %741 = vmatprep.subr.bf16.mxu0 0
    %742 = vmatpush2.bf16.msra.mxu0 0
    %743 = vmatprep.mubr.bf16.mxu0 0
    %744 = vmatmul.mubr.bf16.gmra.mxu0 %v688
    %v745 = vpop.f32.mrf.mxu0
    %v746 = vadd.f32 0.0, %v745
    %v747 = vpop.f32.mrf.mxu0
    %v748 = vpop.f32.mrf.mxu0
    %v749 = vadd.f32 0.0, %v748
    %v750 = vpop.f32.mrf.mxu0
    %751 = vmatprep.mubr.bf16.mxu0 0
    %752 = vmatmul.mubr.bf16.gmra.mxu0 %v691
    %v753 = vpop.f32.mrf.mxu0
    %v754 = vadd.f32 0.0, %v753
    %v755 = vpop.f32.mrf.mxu0
    %v756 = vpop.f32.mrf.mxu0
    %v757 = vadd.f32 0.0, %v756
    %v758 = vpop.f32.mrf.mxu0
    %759 = vmatprep.mubr.bf16.mxu0 0
    %760 = vmatmul.mubr.bf16.gmra.mxu0 %v694
    %v761 = vpop.f32.mrf.mxu0
    %v762 = vadd.f32 0.0, %v761
    %v763 = vpop.f32.mrf.mxu0
    %v764 = vpop.f32.mrf.mxu0
    %v765 = vadd.f32 0.0, %v764
    %v766 = vpop.f32.mrf.mxu0
    %767 = vmatprep.mubr.bf16.mxu0 0
    %768 = vmatmul.mubr.bf16.gmra.mxu0 %v697
    %v769 = vpop.f32.mrf.mxu0
    %v770 = vadd.f32 0.0, %v769
    %v771 = vpop.f32.mrf.mxu0
    %v772 = vpop.f32.mrf.mxu0
    %v773 = vadd.f32 0.0, %v772
    %v774 = vpop.f32.mrf.mxu0
    %775 = vmatprep.mubr.bf16.mxu0 0
    %776 = vmatmul.mubr.bf16.gmra.mxu0 %v700
    %v777 = vpop.f32.mrf.mxu0
    %v778 = vadd.f32 0.0, %v777
    %v779 = vpop.f32.mrf.mxu0
    %v780 = vpop.f32.mrf.mxu0
    %v781 = vadd.f32 0.0, %v780
    %v782 = vpop.f32.mrf.mxu0
    %783 = vmatprep.mubr.bf16.mxu0 0
    %784 = vmatmul.mubr.bf16.gmra.mxu0 %v703
    %v785 = vpop.f32.mrf.mxu0
    %v786 = vadd.f32 0.0, %v785
    %v787 = vpop.f32.mrf.mxu0
    %v788 = vpop.f32.mrf.mxu0
    %v789 = vadd.f32 0.0, %v788
    %v790 = vpop.f32.mrf.mxu0
    %791 = vmatprep.mubr.bf16.mxu0 0
    %792 = vmatmul.mubr.bf16.gmra.mxu0 %v706
    %v793 = vpop.f32.mrf.mxu0
    %v794 = vadd.f32 0.0, %v793
    %v795 = vpop.f32.mrf.mxu0
    %v796 = vpop.f32.mrf.mxu0
    %v797 = vadd.f32 0.0, %v796
    %v798 = vpop.f32.mrf.mxu0
    %799 = vmatprep.mubr.bf16.mxu0 0
    %800 = vmatmul.mubr.bf16.gmra.mxu0 %v709
    %v801 = vpop.f32.mrf.mxu0
    %v802 = vadd.f32 0.0, %v801
    %v803 = vpop.f32.mrf.mxu0
    %v804 = vpop.f32.mrf.mxu0
    %v805 = vadd.f32 0.0, %v804
    %v806 = vpop.f32.mrf.mxu0
    %807 = vdwg.mxu0
    %v808 = vadd.f32 %v616, %v746
    %v809 = vadd.f32 %v617, %v749
    %v810 = vadd.f32 %v618, %v754
    %v811 = vadd.f32 %v619, %v757
    %v812 = vadd.f32 %v620, %v762
    %v813 = vadd.f32 %v621, %v765
    %v814 = vadd.f32 %v622, %v770
    %v815 = vadd.f32 %v623, %v773
    %v816 = vadd.f32 %v624, %v778
    %v817 = vadd.f32 %v625, %v781
    %v818 = vadd.f32 %v626, %v786
    %v819 = vadd.f32 %v627, %v789
    %v820 = vadd.f32 %v628, %v794
    %v821 = vadd.f32 %v629, %v797
    %v822 = vadd.f32 %v630, %v802
    %v823 = vadd.f32 %v631, %v805
    %s824 = scalar_lea.vmem [#allocation5], 64
    %v825 = vld [vmem:[%s824] sm:$0xf]
    %v826 = vld [vmem:[%s824 + $0x4] sm:$0xf]
    %v827 = vld [vmem:[%s824 + $0x8] sm:$0xf]
    %v828 = vld [vmem:[%s824 + $0xc] sm:$0xf]
    %vm829 = vcmask 1045504
    %v830 = vrot.slane %v114, 2
    %v831 = vrot.slane %v115, 2
    %v832 = vsel %vm829, %v830, %v831
    %v833 = vrot.slane %v116, 2
    %v834 = vsel %vm829, %v831, %v833
    %v835 = vrot.slane %v117, 2
    %v836 = vsel %vm829, %v833, %v835
    %v837 = vrot.slane %v118, 2
    %v838 = vsel %vm829, %v835, %v837
    %v839 = vrot.slane %v119, 2
    %v840 = vsel %vm829, %v837, %v839
    %v841 = vrot.slane %v120, 2
    %v842 = vsel %vm829, %v839, %v841
    %v843 = vrot.slane %v121, 2
    %v844 = vsel %vm829, %v841, %v843
    %v845 = vrot.slane 0, 2
    %v846 = vsel %vm829, %v843, %v845
    %v851 = vunpack.c.l.b16 %v825
    %v852 = vunpack.c.l.b16 %v826
    %v853 = vunpack.c.l.b16 %v827
    %v854 = vunpack.c.l.b16 %v828
    %v855 = vpack.c.b16 %v852, %v851
    %v856 = vpack.c.b16 %v854, %v853
    %v860 = vsel %vm212, %v832, 0
    %v863 = vsel %vm212, %v834, 0
    %v866 = vsel %vm212, %v836, 0
    %v869 = vsel %vm212, %v838, 0
    %v872 = vsel %vm212, %v840, 0
    %v875 = vsel %vm212, %v842, 0
    %v878 = vsel %vm212, %v844, 0
    %v881 = vsel %vm212, %v846, 0
    %883 = vmatprep.subr.bf16.mxu0 0
    %884 = vmatpush1.bf16.msra.mxu0 0
    %885 = vmatprep.subr.bf16.mxu0 0
    %886 = vmatpush1.bf16.msra.mxu0 0
    %887 = vmatprep.subr.bf16.mxu0 0
    %888 = vmatpush1.bf16.msra.mxu0 0
    %889 = vmatprep.subr.bf16.mxu0 0
    %890 = vmatpush1.bf16.msra.mxu0 0
    %891 = vmatprep.subr.bf16.mxu0 0
    %892 = vmatpush1.bf16.msra.mxu0 0
    %893 = vmatprep.subr.bf16.mxu0 0
    %894 = vmatpush1.bf16.msra.mxu0 0
    %895 = vmatprep.subr.bf16.mxu0 0
    %896 = vmatpush1.bf16.msra.mxu0 %v856
    %897 = vmatprep.subr.bf16.mxu0 0
    %898 = vmatpush1.bf16.msra.mxu0 %v855
    %899 = vmatprep.subr.bf16.mxu0 0
    %900 = vmatpush2.bf16.msra.mxu0 0
    %901 = vmatprep.subr.bf16.mxu0 0
    %902 = vmatpush2.bf16.msra.mxu0 0
    %903 = vmatprep.subr.bf16.mxu0 0
    %904 = vmatpush2.bf16.msra.mxu0 0
    %905 = vmatprep.subr.bf16.mxu0 0
    %906 = vmatpush2.bf16.msra.mxu0 0
    %907 = vmatprep.subr.bf16.mxu0 0
    %908 = vmatpush2.bf16.msra.mxu0 0
    %909 = vmatprep.subr.bf16.mxu0 0
    %910 = vmatpush2.bf16.msra.mxu0 0
    %911 = vmatprep.subr.bf16.mxu0 0
    %912 = vmatpush2.bf16.msra.mxu0 0
    %913 = vmatprep.subr.bf16.mxu0 0
    %914 = vmatpush2.bf16.msra.mxu0 0
    %915 = vmatprep.mubr.bf16.mxu0 0
    %916 = vmatmul.mubr.bf16.gmra.mxu0 %v860
    %v917 = vpop.f32.mrf.mxu0
    %v918 = vadd.f32 0.0, %v917
    %v919 = vpop.f32.mrf.mxu0
    %v920 = vpop.f32.mrf.mxu0
    %v921 = vadd.f32 0.0, %v920
    %v922 = vpop.f32.mrf.mxu0
    %923 = vmatprep.mubr.bf16.mxu0 0
    %924 = vmatmul.mubr.bf16.gmra.mxu0 %v863
    %v925 = vpop.f32.mrf.mxu0
    %v926 = vadd.f32 0.0, %v925
    %v927 = vpop.f32.mrf.mxu0
    %v928 = vpop.f32.mrf.mxu0
    %v929 = vadd.f32 0.0, %v928
    %v930 = vpop.f32.mrf.mxu0
    %931 = vmatprep.mubr.bf16.mxu0 0
    %932 = vmatmul.mubr.bf16.gmra.mxu0 %v866
    %v933 = vpop.f32.mrf.mxu0
    %v934 = vadd.f32 0.0, %v933
    %v935 = vpop.f32.mrf.mxu0
    %v936 = vpop.f32.mrf.mxu0
    %v937 = vadd.f32 0.0, %v936
    %v938 = vpop.f32.mrf.mxu0
    %939 = vmatprep.mubr.bf16.mxu0 0
    %940 = vmatmul.mubr.bf16.gmra.mxu0 %v869
    %v941 = vpop.f32.mrf.mxu0
    %v942 = vadd.f32 0.0, %v941
    %v943 = vpop.f32.mrf.mxu0
    %v944 = vpop.f32.mrf.mxu0
    %v945 = vadd.f32 0.0, %v944
    %v946 = vpop.f32.mrf.mxu0
    %947 = vmatprep.mubr.bf16.mxu0 0
    %948 = vmatmul.mubr.bf16.gmra.mxu0 %v872
    %v949 = vpop.f32.mrf.mxu0
    %v950 = vadd.f32 0.0, %v949
    %v951 = vpop.f32.mrf.mxu0
    %v952 = vpop.f32.mrf.mxu0
    %v953 = vadd.f32 0.0, %v952
    %v954 = vpop.f32.mrf.mxu0
    %955 = vmatprep.mubr.bf16.mxu0 0
    %956 = vmatmul.mubr.bf16.gmra.mxu0 %v875
    %v957 = vpop.f32.mrf.mxu0
    %v958 = vadd.f32 0.0, %v957
    %v959 = vpop.f32.mrf.mxu0
    %v960 = vpop.f32.mrf.mxu0
    %v961 = vadd.f32 0.0, %v960
    %v962 = vpop.f32.mrf.mxu0
    %963 = vmatprep.mubr.bf16.mxu0 0
    %964 = vmatmul.mubr.bf16.gmra.mxu0 %v878
    %v965 = vpop.f32.mrf.mxu0
    %v966 = vadd.f32 0.0, %v965
    %v967 = vpop.f32.mrf.mxu0
    %v968 = vpop.f32.mrf.mxu0
    %v969 = vadd.f32 0.0, %v968
    %v970 = vpop.f32.mrf.mxu0
    %971 = vmatprep.mubr.bf16.mxu0 0
    %972 = vmatmul.mubr.bf16.gmra.mxu0 %v881
    %v973 = vpop.f32.mrf.mxu0
    %v974 = vadd.f32 0.0, %v973
    %v975 = vpop.f32.mrf.mxu0
    %v976 = vpop.f32.mrf.mxu0
    %v977 = vadd.f32 0.0, %v976
    %v978 = vpop.f32.mrf.mxu0
    %979 = vdwg.mxu0
    %v980 = vadd.f32 %v808, %v918
    %v981 = vadd.f32 %v809, %v921
    %v982 = vadd.f32 %v810, %v926
    %v983 = vadd.f32 %v811, %v929
    %v984 = vadd.f32 %v812, %v934
    %v985 = vadd.f32 %v813, %v937
    %v986 = vadd.f32 %v814, %v942
    %v987 = vadd.f32 %v815, %v945
    %v988 = vadd.f32 %v816, %v950
    %v989 = vadd.f32 %v817, %v953
    %v990 = vadd.f32 %v818, %v958
    %v991 = vadd.f32 %v819, %v961
    %v992 = vadd.f32 %v820, %v966
    %v993 = vadd.f32 %v821, %v969
    %v994 = vadd.f32 %v822, %v974
    %v995 = vadd.f32 %v823, %v977
    %v996 = vld [vmem:[%s2] sm:$0x1]
    %v998 = vlaneseq
    %v999 = vshrl.u32 %v998, 7
    %v1000 = vsub.s32 0, %v999
    %v1001 = vrot.slane %v996, %v1000
    %v1003 = vadd.f32 %v980, %v1001
    %v1004 = vadd.f32 %v981, %v1001
    %v1005 = vadd.f32 %v982, %v1001
    %v1006 = vadd.f32 %v983, %v1001
    %v1007 = vadd.f32 %v984, %v1001
    %v1008 = vadd.f32 %v985, %v1001
    %v1009 = vadd.f32 %v986, %v1001
    %v1010 = vadd.f32 %v987, %v1001
    %v1011 = vadd.f32 %v988, %v1001
    %v1012 = vadd.f32 %v989, %v1001
    %v1013 = vadd.f32 %v990, %v1001
    %v1014 = vadd.f32 %v991, %v1001
    %v1015 = vadd.f32 %v992, %v1001
    %v1016 = vadd.f32 %v993, %v1001
    %v1017 = vadd.f32 %v994, %v1001
    %v1018 = vadd.f32 %v995, %v1001
    %v1019 = vmax.f32 %v1003, 0.0
    %v1020 = vmax.f32 %v1004, 0.0
    %v1021 = vmax.f32 %v1005, 0.0
    %v1022 = vmax.f32 %v1006, 0.0
    %v1023 = vmax.f32 %v1007, 0.0
    %v1024 = vmax.f32 %v1008, 0.0
    %v1025 = vmax.f32 %v1009, 0.0
    %v1026 = vmax.f32 %v1010, 0.0
    %v1027 = vmax.f32 %v1011, 0.0
    %v1028 = vmax.f32 %v1012, 0.0
    %v1029 = vmax.f32 %v1013, 0.0
    %v1030 = vmax.f32 %v1014, 0.0
    %v1031 = vmax.f32 %v1015, 0.0
    %v1032 = vmax.f32 %v1016, 0.0
    %v1033 = vmax.f32 %v1017, 0.0
    %v1034 = vmax.f32 %v1018, 0.0
    %v1035 = vlaneseq
    %v1036 = vshrl.u32 %v1035, 7
    %v1037 = vadd.s32 %v1036, 8
    %v1038 = vadd.s32 %v1036, 16
    %v1039 = vadd.s32 %v1036, 24
    %v1040 = vadd.s32 %v1036, 32
    %v1041 = vadd.s32 %v1036, 40
    %v1042 = vadd.s32 %v1036, 48
    %v1043 = vadd.s32 %v1036, 56
    %v1044 = vadd.s32 %v1036, 64
    %v1045 = vadd.s32 %v1036, 72
    %v1046 = vadd.s32 %v1036, 80
    %v1047 = vadd.s32 %v1036, 88
    %v1048 = vadd.s32 %v1036, 96
    %v1049 = vadd.s32 %v1036, 104
    %v1050 = vadd.s32 %v1036, 112
    %v1051 = vadd.s32 %v1036, 120
    %vm1052 = vcmp.lt.s32.totalorder %v1036, 0
    %v1053 = vsub.s32 0, %v1036
    %v1054 = vsel %vm1052, %v1053, %v1036
    %v1055 = vshrl.u32 %v1054, 4
    %v1056 = vand.u32 %v1054, 15
    %v1057 = vsub.s32 0, %v1056
    %v1058 = vsel %vm1052, %v1057, %v1056
    %vm1059 = vcmp.lt.s32.totalorder %v1037, 0
    %v1060 = vsub.s32 0, %v1037
    %v1061 = vsel %vm1059, %v1060, %v1037
    %v1062 = vshrl.u32 %v1061, 4
    %v1063 = vand.u32 %v1061, 15
    %v1064 = vsub.s32 0, %v1063
    %v1065 = vsel %vm1059, %v1064, %v1063
    %vm1066 = vcmp.lt.s32.totalorder %v1038, 0
    %v1067 = vsub.s32 0, %v1038
    %v1068 = vsel %vm1066, %v1067, %v1038
    %v1069 = vshrl.u32 %v1068, 4
    %v1070 = vand.u32 %v1068, 15
    %v1071 = vsub.s32 0, %v1070
    %v1072 = vsel %vm1066, %v1071, %v1070
    %vm1073 = vcmp.lt.s32.totalorder %v1039, 0
    %v1074 = vsub.s32 0, %v1039
    %v1075 = vsel %vm1073, %v1074, %v1039
    %v1076 = vshrl.u32 %v1075, 4
    %v1077 = vand.u32 %v1075, 15
    %v1078 = vsub.s32 0, %v1077
    %v1079 = vsel %vm1073, %v1078, %v1077
    %vm1080 = vcmp.lt.s32.totalorder %v1040, 0
    %v1081 = vsub.s32 0, %v1040
    %v1082 = vsel %vm1080, %v1081, %v1040
    %v1083 = vshrl.u32 %v1082, 4
    %v1084 = vand.u32 %v1082, 15
    %v1085 = vsub.s32 0, %v1084
    %v1086 = vsel %vm1080, %v1085, %v1084
    %vm1087 = vcmp.lt.s32.totalorder %v1041, 0
    %v1088 = vsub.s32 0, %v1041
    %v1089 = vsel %vm1087, %v1088, %v1041
    %v1090 = vshrl.u32 %v1089, 4
    %v1091 = vand.u32 %v1089, 15
    %v1092 = vsub.s32 0, %v1091
    %v1093 = vsel %vm1087, %v1092, %v1091
    %vm1094 = vcmp.lt.s32.totalorder %v1042, 0
    %v1095 = vsub.s32 0, %v1042
    %v1096 = vsel %vm1094, %v1095, %v1042
    %v1097 = vshrl.u32 %v1096, 4
    %v1098 = vand.u32 %v1096, 15
    %v1099 = vsub.s32 0, %v1098
    %v1100 = vsel %vm1094, %v1099, %v1098
    %vm1101 = vcmp.lt.s32.totalorder %v1043, 0
    %v1102 = vsub.s32 0, %v1043
    %v1103 = vsel %vm1101, %v1102, %v1043
    %v1104 = vshrl.u32 %v1103, 4
    %v1105 = vand.u32 %v1103, 15
    %v1106 = vsub.s32 0, %v1105
    %v1107 = vsel %vm1101, %v1106, %v1105
    %vm1108 = vcmp.lt.s32.totalorder %v1044, 0
    %v1109 = vsub.s32 0, %v1044
    %v1110 = vsel %vm1108, %v1109, %v1044
    %v1111 = vshrl.u32 %v1110, 4
    %v1112 = vand.u32 %v1110, 15
    %v1113 = vsub.s32 0, %v1112
    %v1114 = vsel %vm1108, %v1113, %v1112
    %vm1115 = vcmp.lt.s32.totalorder %v1045, 0
    %v1116 = vsub.s32 0, %v1045
    %v1117 = vsel %vm1115, %v1116, %v1045
    %v1118 = vshrl.u32 %v1117, 4
    %v1119 = vand.u32 %v1117, 15
    %v1120 = vsub.s32 0, %v1119
    %v1121 = vsel %vm1115, %v1120, %v1119
    %vm1122 = vcmp.lt.s32.totalorder %v1046, 0
    %v1123 = vsub.s32 0, %v1046
    %v1124 = vsel %vm1122, %v1123, %v1046
    %v1125 = vshrl.u32 %v1124, 4
    %v1126 = vand.u32 %v1124, 15
    %v1127 = vsub.s32 0, %v1126
    %v1128 = vsel %vm1122, %v1127, %v1126
    %vm1129 = vcmp.lt.s32.totalorder %v1047, 0
    %v1130 = vsub.s32 0, %v1047
    %v1131 = vsel %vm1129, %v1130, %v1047
    %v1132 = vshrl.u32 %v1131, 4
    %v1133 = vand.u32 %v1131, 15
    %v1134 = vsub.s32 0, %v1133
    %v1135 = vsel %vm1129, %v1134, %v1133
    %vm1136 = vcmp.lt.s32.totalorder %v1048, 0
    %v1137 = vsub.s32 0, %v1048
    %v1138 = vsel %vm1136, %v1137, %v1048
    %v1139 = vshrl.u32 %v1138, 4
    %v1140 = vand.u32 %v1138, 15
    %v1141 = vsub.s32 0, %v1140
    %v1142 = vsel %vm1136, %v1141, %v1140
    %vm1143 = vcmp.lt.s32.totalorder %v1049, 0
    %v1144 = vsub.s32 0, %v1049
    %v1145 = vsel %vm1143, %v1144, %v1049
    %v1146 = vshrl.u32 %v1145, 4
    %v1147 = vand.u32 %v1145, 15
    %v1148 = vsub.s32 0, %v1147
    %v1149 = vsel %vm1143, %v1148, %v1147
    %vm1150 = vcmp.lt.s32.totalorder %v1050, 0
    %v1151 = vsub.s32 0, %v1050
    %v1152 = vsel %vm1150, %v1151, %v1050
    %v1153 = vshrl.u32 %v1152, 4
    %v1154 = vand.u32 %v1152, 15
    %v1155 = vsub.s32 0, %v1154
    %v1156 = vsel %vm1150, %v1155, %v1154
    %vm1157 = vcmp.lt.s32.totalorder %v1051, 0
    %v1158 = vsub.s32 0, %v1051
    %v1159 = vsel %vm1157, %v1158, %v1051
    %v1160 = vshrl.u32 %v1159, 4
    %v1161 = vand.u32 %v1159, 15
    %v1162 = vsub.s32 0, %v1161
    %v1163 = vsel %vm1157, %v1162, %v1161
    %vm1164 = vcmp.ne.s32.totalorder %v1058, 0
    %vm1165 = vcmp.ne.s32.totalorder %v1065, 0
    %vm1166 = vcmp.ne.s32.totalorder %v1072, 0
    %vm1167 = vcmp.ne.s32.totalorder %v1079, 0
    %vm1168 = vcmp.ne.s32.totalorder %v1086, 0
    %vm1169 = vcmp.ne.s32.totalorder %v1093, 0
    %vm1170 = vcmp.ne.s32.totalorder %v1100, 0
    %vm1171 = vcmp.ne.s32.totalorder %v1107, 0
    %vm1172 = vcmp.ne.s32.totalorder %v1114, 0
    %vm1173 = vcmp.ne.s32.totalorder %v1121, 0
    %vm1174 = vcmp.ne.s32.totalorder %v1128, 0
    %vm1175 = vcmp.ne.s32.totalorder %v1135, 0
    %vm1176 = vcmp.ne.s32.totalorder %v1142, 0
    %vm1177 = vcmp.ne.s32.totalorder %v1149, 0
    %vm1178 = vcmp.ne.s32.totalorder %v1156, 0
    %vm1179 = vcmp.ne.s32.totalorder %v1163, 0
    %vm1180 = vcmp.lt.s32.totalorder %v1058, 0
    %vm1181 = vcmp.lt.s32.totalorder %v1065, 0
    %vm1182 = vcmp.lt.s32.totalorder %v1072, 0
    %vm1183 = vcmp.lt.s32.totalorder %v1079, 0
    %vm1184 = vcmp.lt.s32.totalorder %v1086, 0
    %vm1185 = vcmp.lt.s32.totalorder %v1093, 0
    %vm1186 = vcmp.lt.s32.totalorder %v1100, 0
    %vm1187 = vcmp.lt.s32.totalorder %v1107, 0
    %vm1188 = vcmp.lt.s32.totalorder %v1114, 0
    %vm1189 = vcmp.lt.s32.totalorder %v1121, 0
    %vm1190 = vcmp.lt.s32.totalorder %v1128, 0
    %vm1191 = vcmp.lt.s32.totalorder %v1135, 0
    %vm1192 = vcmp.lt.s32.totalorder %v1142, 0
    %vm1193 = vcmp.lt.s32.totalorder %v1149, 0
    %vm1194 = vcmp.lt.s32.totalorder %v1156, 0
    %vm1195 = vcmp.lt.s32.totalorder %v1163, 0
    %vm1196 = vmand %vm1180, %vm1164
    %vm1197 = vmand %vm1181, %vm1165
    %vm1198 = vmand %vm1182, %vm1166
    %vm1199 = vmand %vm1183, %vm1167
    %vm1200 = vmand %vm1184, %vm1168
    %vm1201 = vmand %vm1185, %vm1169
    %vm1202 = vmand %vm1186, %vm1170
    %vm1203 = vmand %vm1187, %vm1171
    %vm1204 = vmand %vm1188, %vm1172
    %vm1205 = vmand %vm1189, %vm1173
    %vm1206 = vmand %vm1190, %vm1174
    %vm1207 = vmand %vm1191, %vm1175
    %vm1208 = vmand %vm1192, %vm1176
    %vm1209 = vmand %vm1193, %vm1177
    %vm1210 = vmand %vm1194, %vm1178
    %vm1211 = vmand %vm1195, %vm1179
    %v1212 = vadd.s32 %v1058, 16
    %v1213 = vadd.s32 %v1065, 16
    %v1214 = vadd.s32 %v1072, 16
    %v1215 = vadd.s32 %v1079, 16
    %v1216 = vadd.s32 %v1086, 16
    %v1217 = vadd.s32 %v1093, 16
    %v1218 = vadd.s32 %v1100, 16
    %v1219 = vadd.s32 %v1107, 16
    %v1220 = vadd.s32 %v1114, 16
    %v1221 = vadd.s32 %v1121, 16
    %v1222 = vadd.s32 %v1128, 16
    %v1223 = vadd.s32 %v1135, 16
    %v1224 = vadd.s32 %v1142, 16
    %v1225 = vadd.s32 %v1149, 16
    %v1226 = vadd.s32 %v1156, 16
    %v1227 = vadd.s32 %v1163, 16
    %v1228 = vsel %vm1196, %v1212, %v1058
    %v1229 = vsel %vm1197, %v1213, %v1065
    %v1230 = vsel %vm1198, %v1214, %v1072
    %v1231 = vsel %vm1199, %v1215, %v1079
    %v1232 = vsel %vm1200, %v1216, %v1086
    %v1233 = vsel %vm1201, %v1217, %v1093
    %v1234 = vsel %vm1202, %v1218, %v1100
    %v1235 = vsel %vm1203, %v1219, %v1107
    %v1236 = vsel %vm1204, %v1220, %v1114
    %v1237 = vsel %vm1205, %v1221, %v1121
    %v1238 = vsel %vm1206, %v1222, %v1128
    %v1239 = vsel %vm1207, %v1223, %v1135
    %v1240 = vsel %vm1208, %v1224, %v1142
    %v1241 = vsel %vm1209, %v1225, %v1149
    %v1242 = vsel %vm1210, %v1226, %v1156
    %v1243 = vsel %vm1211, %v1227, %v1163
    %v1244 = vlaneseq
    %v1245 = vand.u32 %v1244, 127
    %vm1246 = vcmp.ge.s32.totalorder %v1245, 16
    %v1247 = vsel %vm1246, 1, 0
    %v1248 = vadd.s32 %v1247, 3
    %vm1249 = vcmp.ge.s32.totalorder %v1245, 32
    %v1250 = vsel %vm1249, 1, 0
    %v1251 = vadd.s32 %v1248, %v1250
    %v1252 = vadd.s32 %v1228, %v1251
    %v1253 = vadd.s32 %v1229, %v1251
    %v1254 = vadd.s32 %v1230, %v1251
    %v1255 = vadd.s32 %v1231, %v1251
    %v1256 = vadd.s32 %v1232, %v1251
    %v1257 = vadd.s32 %v1233, %v1251
    %v1258 = vadd.s32 %v1234, %v1251
    %v1259 = vadd.s32 %v1235, %v1251
    %v1260 = vadd.s32 %v1236, %v1251
    %v1261 = vadd.s32 %v1237, %v1251
    %v1262 = vadd.s32 %v1238, %v1251
    %v1263 = vadd.s32 %v1239, %v1251
    %v1264 = vadd.s32 %v1240, %v1251
    %v1265 = vadd.s32 %v1241, %v1251
    %v1266 = vadd.s32 %v1242, %v1251
    %v1267 = vadd.s32 %v1243, %v1251
    %vm1268 = vcmp.le.s32.totalorder %v1252, 16
    %vm1269 = vcmp.le.s32.totalorder %v1253, 16
    %vm1270 = vcmp.le.s32.totalorder %v1254, 16
    %vm1271 = vcmp.le.s32.totalorder %v1255, 16
    %vm1272 = vcmp.le.s32.totalorder %v1256, 16
    %vm1273 = vcmp.le.s32.totalorder %v1257, 16
    %vm1274 = vcmp.le.s32.totalorder %v1258, 16
    %vm1275 = vcmp.le.s32.totalorder %v1259, 16
    %vm1276 = vcmp.le.s32.totalorder %v1260, 16
    %vm1277 = vcmp.le.s32.totalorder %v1261, 16
    %vm1278 = vcmp.le.s32.totalorder %v1262, 16
    %vm1279 = vcmp.le.s32.totalorder %v1263, 16
    %vm1280 = vcmp.le.s32.totalorder %v1264, 16
    %vm1281 = vcmp.le.s32.totalorder %v1265, 16
    %vm1282 = vcmp.le.s32.totalorder %v1266, 16
    %vm1283 = vcmp.le.s32.totalorder %v1267, 16
    %v1284 = vsel %vm1268, %v1019, 0.0
    %v1285 = vsel %vm1269, %v1020, 0.0
    %v1286 = vsel %vm1270, %v1021, 0.0
    %v1287 = vsel %vm1271, %v1022, 0.0
    %v1288 = vsel %vm1272, %v1023, 0.0
    %v1289 = vsel %vm1273, %v1024, 0.0
    %v1290 = vsel %vm1274, %v1025, 0.0
    %v1291 = vsel %vm1275, %v1026, 0.0
    %v1292 = vsel %vm1276, %v1027, 0.0
    %v1293 = vsel %vm1277, %v1028, 0.0
    %v1294 = vsel %vm1278, %v1029, 0.0
    %v1295 = vsel %vm1279, %v1030, 0.0
    %v1296 = vsel %vm1280, %v1031, 0.0
    %v1297 = vsel %vm1281, %v1032, 0.0
    %v1298 = vsel %vm1282, %v1033, 0.0
    %v1299 = vsel %vm1283, %v1034, 0.0
    %vm1300 = vcmask 392192
    %v1301 = vsel %vm1300, %v1284, -inf
    %v1302 = vsel %vm1300, %v1285, -inf
    %v1303 = vmax.f32 %v1301, %v1302
    %v1304 = vrot.slane %v1303, 4
    %v1305 = vmax.f32 %v1303, %v1304
    %v1306 = vrot.slane %v1305, 2
    %v1307 = vmax.f32 %v1305, %v1306
    %v1308 = vrot.slane %v1307, 1
    %v1309 = vmax.f32 %v1307, %v1308
    %v1310 = vsel %vm1300, %v1286, -inf
    %v1311 = vsel %vm1300, %v1287, -inf
    %v1312 = vmax.f32 %v1310, %v1311
    %v1313 = vrot.slane %v1312, 4
    %v1314 = vmax.f32 %v1312, %v1313
    %v1315 = vrot.slane %v1314, 2
    %v1316 = vmax.f32 %v1314, %v1315
    %v1317 = vrot.slane %v1316, 1
    %v1318 = vmax.f32 %v1316, %v1317
    %v1319 = vsel %vm1300, %v1288, -inf
    %v1320 = vsel %vm1300, %v1289, -inf
    %v1321 = vmax.f32 %v1319, %v1320
    %v1322 = vrot.slane %v1321, 4
    %v1323 = vmax.f32 %v1321, %v1322
    %v1324 = vrot.slane %v1323, 2
    %v1325 = vmax.f32 %v1323, %v1324
    %v1326 = vrot.slane %v1325, 1
    %v1327 = vmax.f32 %v1325, %v1326
    %v1328 = vsel %vm1300, %v1290, -inf
    %v1329 = vsel %vm1300, %v1291, -inf
    %v1330 = vmax.f32 %v1328, %v1329
    %v1331 = vrot.slane %v1330, 4
    %v1332 = vmax.f32 %v1330, %v1331
    %v1333 = vrot.slane %v1332, 2
    %v1334 = vmax.f32 %v1332, %v1333
    %v1335 = vrot.slane %v1334, 1
    %v1336 = vmax.f32 %v1334, %v1335
    %v1337 = vsel %vm1300, %v1292, -inf
    %v1338 = vsel %vm1300, %v1293, -inf
    %v1339 = vmax.f32 %v1337, %v1338
    %v1340 = vrot.slane %v1339, 4
    %v1341 = vmax.f32 %v1339, %v1340
    %v1342 = vrot.slane %v1341, 2
    %v1343 = vmax.f32 %v1341, %v1342
    %v1344 = vrot.slane %v1343, 1
    %v1345 = vmax.f32 %v1343, %v1344
    %v1346 = vsel %vm1300, %v1294, -inf
    %v1347 = vsel %vm1300, %v1295, -inf
    %v1348 = vmax.f32 %v1346, %v1347
    %v1349 = vrot.slane %v1348, 4
    %v1350 = vmax.f32 %v1348, %v1349
    %v1351 = vrot.slane %v1350, 2
    %v1352 = vmax.f32 %v1350, %v1351
    %v1353 = vrot.slane %v1352, 1
    %v1354 = vmax.f32 %v1352, %v1353
    %v1355 = vsel %vm1300, %v1296, -inf
    %v1356 = vsel %vm1300, %v1297, -inf
    %v1357 = vmax.f32 %v1355, %v1356
    %v1358 = vrot.slane %v1357, 4
    %v1359 = vmax.f32 %v1357, %v1358
    %v1360 = vrot.slane %v1359, 2
    %v1361 = vmax.f32 %v1359, %v1360
    %v1362 = vrot.slane %v1361, 1
    %v1363 = vmax.f32 %v1361, %v1362
    %v1364 = vsel %vm1300, %v1298, -inf
    %v1365 = vsel %vm1300, %v1299, -inf
    %v1366 = vmax.f32 %v1364, %v1365
    %v1367 = vrot.slane %v1366, 4
    %v1368 = vmax.f32 %v1366, %v1367
    %v1369 = vrot.slane %v1368, 2
    %v1370 = vmax.f32 %v1368, %v1369
    %v1371 = vrot.slane %v1370, 1
    %v1372 = vmax.f32 %v1370, %v1371
    %v1373 = vld [vmem:[#allocation7] sm:$0xff]
    %v1374 = vld [vmem:[#allocation7 + $0x8] sm:$0xff]
    %v1375 = vld [vmem:[#allocation7 + $0x10] sm:$0xff]
    %v1376 = vld [vmem:[#allocation7 + $0x18] sm:$0xff]
    %v1377 = vld [vmem:[#allocation7 + $0x20] sm:$0xff]
    %v1378 = vld [vmem:[#allocation7 + $0x28] sm:$0xff]
    %v1379 = vld [vmem:[%s4] sm:$0x1]
    %v1381 = vlaneseq
    %v1382 = vshrl.u32 %v1381, 7
    %v1383 = vsub.s32 0, %v1382
    %v1384 = vrot.slane %v1379, %v1383
    %vm1394 = vcmask 1041409
    %v1395 = vsel %vm1394, %v1318, %v1309
    %vm1396 = vcmask 1042434
    %v1397 = vsel %vm1396, %v1327, %v1395
    %vm1398 = vcmask 1043459
    %v1399 = vsel %vm1398, %v1336, %v1397
    %vm1400 = vcmask 1044484
    %v1401 = vsel %vm1400, %v1345, %v1399
    %vm1402 = vcmask 1045509
    %v1403 = vsel %vm1402, %v1354, %v1401
    %vm1404 = vcmask 1046534
    %v1405 = vsel %vm1404, %v1363, %v1403
    %vm1406 = vcmask 1047559
    %v1407 = vsel %vm1406, %v1372, %v1405
    %v1408 = vsel %vm1300, %v1407, 0
    %1410 = vmatprep.subr.mxu0 0.0
    %1411 = vmatpush1.msra.mxu0 0.0
    %1412 = vmatprep.subr.mxu0 0.0
    %1413 = vmatpush1.msra.mxu0 0.0
    %1414 = vmatprep.subr.mxu0 0.0
    %1415 = vmatpush1.msra.mxu0 0.0
    %1416 = vmatprep.subr.mxu0 0.0
    %1417 = vmatpush1.msra.mxu0 0.0
    %1418 = vmatprep.subr.mxu0 0.0
    %1419 = vmatpush1.msra.mxu0 0.0
    %1420 = vmatprep.subr.mxu0 0.0
    %1421 = vmatpush1.msra.mxu0 0.0
    %1422 = vmatprep.subr.mxu0 0.0
    %1423 = vmatpush1.msra.mxu0 0.0
    %1424 = vmatprep.subr.mxu0 0.0
    %1425 = vmatpush1.msra.mxu0 0.0
    %1426 = vmatprep.subr.mxu0 0.0
    %1427 = vmatpush1.msra.mxu0 0.0
    %1428 = vmatprep.subr.mxu0 0.0
    %1429 = vmatpush1.msra.mxu0 0.0
    %1430 = vmatprep.subr.mxu0 0.0
    %1431 = vmatpush1.msra.mxu0 %v1378
    %1432 = vmatprep.subr.mxu0 0.0
    %1433 = vmatpush1.msra.mxu0 %v1377
    %1434 = vmatprep.subr.mxu0 0.0
    %1435 = vmatpush1.msra.mxu0 %v1376
    %1436 = vmatprep.subr.mxu0 0.0
    %1437 = vmatpush1.msra.mxu0 %v1375
    %1438 = vmatprep.subr.mxu0 0.0
    %1439 = vmatpush1.msra.mxu0 %v1374
    %1440 = vmatprep.subr.mxu0 0.0
    %1441 = vmatpush1.msra.mxu0 %v1373
    %1442 = vmatprep.subr.mxu0 0.0
    %1443 = vmatpush2.msra.mxu0 0.0
    %1444 = vmatprep.subr.mxu0 0.0
    %1445 = vmatpush2.msra.mxu0 0.0
    %1446 = vmatprep.subr.mxu0 0.0
    %1447 = vmatpush2.msra.mxu0 0.0
    %1448 = vmatprep.subr.mxu0 0.0
    %1449 = vmatpush2.msra.mxu0 0.0
    %1450 = vmatprep.subr.mxu0 0.0
    %1451 = vmatpush2.msra.mxu0 0.0
    %1452 = vmatprep.subr.mxu0 0.0
    %1453 = vmatpush2.msra.mxu0 0.0
    %1454 = vmatprep.subr.mxu0 0.0
    %1455 = vmatpush2.msra.mxu0 0.0
    %1456 = vmatprep.subr.mxu0 0.0
    %1457 = vmatpush2.msra.mxu0 0.0
    %1458 = vmatprep.subr.mxu0 0.0
    %1459 = vmatpush2.msra.mxu0 0.0
    %1460 = vmatprep.subr.mxu0 0.0
    %1461 = vmatpush2.msra.mxu0 0.0
    %1462 = vmatprep.subr.mxu0 0.0
    %1463 = vmatpush2.msra.mxu0 0.0
    %1464 = vmatprep.subr.mxu0 0.0
    %1465 = vmatpush2.msra.mxu0 0.0
    %1466 = vmatprep.subr.mxu0 0.0
    %1467 = vmatpush2.msra.mxu0 0.0
    %1468 = vmatprep.subr.mxu0 0.0
    %1469 = vmatpush2.msra.mxu0 0.0
    %1470 = vmatprep.subr.mxu0 0.0
    %1471 = vmatpush2.msra.mxu0 0.0
    %1472 = vmatprep.subr.mxu0 0.0
    %1473 = vmatpush2.msra.mxu0 0.0
    %1474 = vmatprep.mubr.f32.mxu0 0.0
    %1475 = vmatmul.mubr.f32.gmra.mxu0 %v1408
    %v1476 = vpop.f32.mrf.mxu0
    %v1477 = vadd.f32 %v1384, %v1476
    %v1478 = vpop.f32.mrf.mxu0
    %1479 = vdwg.mxu0
    %1480 = vmax.xlane.f32.xlu0 %v1477
    %v1481 = vpop.xlane.xlu0 %1480
    %v1482 = vsub.f32 %v1477, %v1481
    %v1483 = vmul.f32 %v1482, 1.442695
    %v1484 = vpow.pop %v1483
    %1485 = vadd.xlane.f32.xlu0 %v1484
    %v1486 = vpop.xlane.xlu0 %1485
    %v1487 = vrcp.pop %v1486
    %v1488 = vmul.f32 %v1484, %v1487
    %1489 = vst [vmem:[#allocation8] sm:$0xff] %v1488
    %v1490 = vlog2.pop %v1486
    %v1491 = vmul.f32 %v1490, 0.6931472
    %v1492 = vsub.f32 %v1482, %v1491
    %1493 = vst [vmem:[#allocation9] sm:$0xff] %v1492
    // Predicated region
    $region34: #{tpu_custom_call.1} parent=1 // pred_check
      _
    $region35: #{tpu_custom_call.1} parent=1 // pred_check_branch
      %1495 = sbr.rel (0) target = $region37
    $region36: #{tpu_custom_call.1} parent=1 // pred_region
      %s1497 = ssub.s32 128, 128
      %1498 = vsyncadd [#allocation4], %s1497
      %s1500 = sshll.u32 [#allocation8], 4
      %s1501 = int_to_ptr.vmem [resolvable:$true] %s1500
      %1503 = dma.vmem_to_hbm [thread:$0]  %s1501, 128, %s5, [#allocation4]
    $region37: #{tpu_custom_call.1} parent=1 // pred_fallthru
      _
    // Predicated region
    $region38: #{tpu_custom_call.1} parent=1 // pred_check
      _
    $region39: #{tpu_custom_call.1} parent=1 // pred_check_branch
      %1505 = sbr.rel (0) target = $region41
    $region40: #{tpu_custom_call.1} parent=1 // pred_region
      %s1507 = ssub.s32 128, 128
      %1508 = vsyncadd [#allocation10], %s1507
      %s1510 = sshll.u32 [#allocation9], 4
      %s1511 = int_to_ptr.vmem [resolvable:$true] %s1510
      %1513 = dma.vmem_to_hbm [thread:$0]  %s1511, 128, %s6, [#allocation10]
    $region41: #{tpu_custom_call.1} parent=1 // pred_fallthru
      _
    // Predicated region
    $region42: #{tpu_custom_call.1} parent=1 // pred_check
      _
    $region43: #{tpu_custom_call.1} parent=1 // pred_check_branch
      %1515 = sbr.rel (0) target = $region45
    $region44: #{tpu_custom_call.1} parent=1 // pred_region
      %1516 = dma.done [#allocation4], 128
    $region45: #{tpu_custom_call.1} parent=1 // pred_fallthru
      _
    // Predicated region
    $region46: #{tpu_custom_call.1} parent=1 // pred_check
      _
    $region47: #{tpu_custom_call.1} parent=1 // pred_check_branch
      %1518 = sbr.rel (0) target = $region49
    $region48: #{tpu_custom_call.1} parent=1 // pred_region
      %1519 = dma.done [#allocation10], 128
    $region49: #{tpu_custom_call.1} parent=1 // pred_fallthru
      _
    %1520 = vsyncpa [#allocation3], 1
    %1521 = vsyncpa [#allocation6], 1
    %1522 = vsyncpa [#allocation4], 1
    %1523 = vsyncpa [#allocation10], 1

</llo_original>
